<compile_context>
chip_gen: v5e
topology: v5e:2x2
jax: 0.10.0
libtpu: 0.0.40
codegen_flags: <defaults>
</compile_context>

<pallas_src>
import functools

import jax
import jax.numpy as jnp
from jax.experimental import pallas as pl
from jax.experimental.pallas import tpu as pltpu

BN_EPS = 1e-5
FPAD = 128                       # every feature dim zero-padded to 128 lanes
# bf16 matmul operands: ~2-4.6x MXU rate + half the DMA bytes on v6e/v7x; the
# 0/1 structural matrices stay exact.  Set to jnp.float32 for bit parity with
# an f32 PyTorch reference.  Elementwise math is f32 regardless (v5e-safe).
MATMUL_DTYPE = jnp.bfloat16


# ---------------------------------------------------------------------------
# Single fused kernel: all R-GIN layers + global mean pool for ONE graph-batch
# (grid axis = graph-batch index, marked "parallel").
# ---------------------------------------------------------------------------
def rgin_gnn_kernel(x_ref, ops_ref, w_ref, b_ref, o_ref, *,
                    num_layers, num_relations, n_nodes, num_graphs):
    L, R, N, G = num_layers, num_relations, n_nodes, num_graphs

    x = x_ref[0]                                        # [N, FPAD] f32
    # Loop-invariant operands: load once (already MATMUL_DTYPE from the host).
    adjs = [ops_ref[0, r * N:(r + 1) * N, :] for r in range(R)]   # [N, N] each
    pool01 = ops_ref[0, R * N:R * N + G, :]                        # [G, N] 0/1

    for i in range(L):                                  # static unroll
        x_mm = x.astype(MATMUL_DTYPE)                   # hoisted: reused R+1x
        # RGINConv: x_new = self_loop_conv(x) + sum_r GINConv_r(x, edges_r)
        acc = jnp.dot(x_mm, w_ref[i, 0],
                      preferred_element_type=jnp.float32) + b_ref[i, 0]
        for r in range(R):
            # GINConv (eps=0): h = x + sum_{j in N_r(i)} x_j
            h = x + jnp.dot(adjs[r], x_mm, preferred_element_type=jnp.float32)
            # MLP: Linear(+folded eval BN) -> ReLU -> Linear   (all elementwise f32)
            z = jnp.dot(h.astype(MATMUL_DTYPE), w_ref[i, 1 + 2 * r],
                        preferred_element_type=jnp.float32) + b_ref[i, 1 + 2 * r]
            z = jnp.maximum(z, 0.0)
            z = jnp.dot(z.astype(MATMUL_DTYPE), w_ref[i, 2 + 2 * r],
                        preferred_element_type=jnp.float32) + b_ref[i, 2 + 2 * r]
            acc = acc + z
        if i != L - 1:
            acc = jnp.maximum(acc, 0.0)                 # act_fn; dropout=identity (eval)
        x = acc

    # global_mean_pool: exact — 0/1 sum-pool matmul (f32 acc) / f32 counts.
    counts = jnp.sum(pool01.astype(jnp.float32), axis=-1, keepdims=True)
    pooled = jnp.dot(pool01, x.astype(MATMUL_DTYPE),
                     preferred_element_type=jnp.float32)
    o_ref[0] = pooled / jnp.maximum(counts, 1.0)        # [G, FPAD] lane-dense store


def gnn_forward(x_pad, ops, W, B, *, num_layers, num_relations, n_nodes,
                num_graphs, out_dim):
    num_batches = x_pad.shape[0]
    ops_rows = num_relations * n_nodes + num_graphs
    kernel = functools.partial(
        rgin_gnn_kernel, num_layers=num_layers, num_relations=num_relations,
        n_nodes=n_nodes, num_graphs=num_graphs)
    out = pl.pallas_call(
        kernel,
        grid=(num_batches,),
        in_specs=[
            pl.BlockSpec((1, n_nodes, FPAD), lambda b: (b, 0, 0)),      # per-batch x
            pl.BlockSpec((1, ops_rows, n_nodes), lambda b: (b, 0, 0)),  # per-batch ops slab
            pl.BlockSpec(W.shape, lambda b: (0, 0, 0, 0)),              # weights: resident
            pl.BlockSpec(B.shape, lambda b: (0, 0, 0, 0)),              # biases:  resident
        ],
        out_specs=pl.BlockSpec((1, num_graphs, FPAD), lambda b: (b, 0, 0)),
        out_shape=jax.ShapeDtypeStruct((num_batches, num_graphs, FPAD), jnp.float32),
        compiler_params=pltpu.CompilerParams(
            dimension_semantics=("parallel",)),          # shards batches over v7x's 2 TCs
    )(x_pad, ops, W, B)
    return out[:, :, :out_dim]                           # drop padded lanes


# ---------------------------------------------------------------------------
# Host-side setup: operators (built once per graph-batch) + packed params.
# ---------------------------------------------------------------------------
def pad2(a, rows, cols):
    return jnp.pad(a, ((0, rows - a.shape[0]), (0, cols - a.shape[1])))


def fold_bn(w, b, bn):
    # eval-mode BatchNorm1d (between Linear1 and ReLU) folded into Linear1 (exact).
    scale = bn["gamma"] / jnp.sqrt(bn["var"] + BN_EPS)
    return w * scale, (b - bn["mean"]) * scale + bn["beta"]


def pack_params(params, num_relations):
    Ws, Bs = [], []
    for p in params:
        w_slabs = [pad2(p["w_sl"], FPAD, FPAD)]
        b_slabs = [pad2(p["b_sl"], 1, FPAD)]
        for r in range(num_relations):
            q = p["rel"][r]
            w1f, b1f = fold_bn(q["w1"], q["b1"], q["bn"])
            w_slabs += [pad2(w1f, FPAD, FPAD), pad2(q["w2"], FPAD, FPAD)]
            b_slabs += [pad2(b1f, 1, FPAD), pad2(q["b2"], 1, FPAD)]
        Ws.append(jnp.stack(w_slabs))                     # [1+2R, FPAD, FPAD]
        Bs.append(jnp.stack(b_slabs))                     # [1+2R, 1, FPAD]
    W = jnp.stack(Ws).astype(MATMUL_DTYPE)                # pre-cast: half the DMA bytes
    B = jnp.stack(Bs)                                     # biases stay f32 (elementwise)
    return W, B


def build_ops(edge_index, edge_type, batch, n_nodes, num_graphs, num_relations):
    """Concatenate [adj_0; ...; adj_{R-1}; pool01] into one [R*N+G, N] slab."""
    src, dst = edge_index[0], edge_index[1]
    rows = []
    for r in range(num_relations):
        m = (edge_type == r).astype(jnp.float32)
        rows.append(jnp.zeros((n_nodes, n_nodes), jnp.float32).at[dst, src].add(m))
    pool01 = jax.nn.one_hot(batch, num_graphs, dtype=jnp.float32).T       # [G, N] 0/1
    return jnp.concatenate(rows + [pool01], axis=0).astype(MATMUL_DTYPE)


# ---------------------------------------------------------------------------
# Deterministic synthetic parameters (PyTorch nn.Linear / fresh BN init).
# ---------------------------------------------------------------------------
def init_linear(key, fan_in, fan_out):
    k1, k2 = jax.random.split(key)
    bound = 1.0 / float(fan_in) ** 0.5
    w = jax.random.uniform(k1, (fan_in, fan_out), jnp.float32, -bound, bound)
    b = jax.random.uniform(k2, (1, fan_out), jnp.float32, -bound, bound)
    return w, b


def init_params(key, num_features, num_relations):
    params = []
    for fi, fo in zip(num_features[:-1], num_features[1:]):
        key, k_sl = jax.random.split(key)
        w_sl, b_sl = init_linear(k_sl, fi, fo)
        rels = []
        for _ in range(num_relations):
            key, k1, k2 = jax.random.split(key, 3)
            w1, b1 = init_linear(k1, fi, fo)
            w2, b2 = init_linear(k2, fo, fo)
            bn = dict(gamma=jnp.ones((1, fo), jnp.float32),
                      beta=jnp.zeros((1, fo), jnp.float32),
                      mean=jnp.zeros((1, fo), jnp.float32),
                      var=jnp.ones((1, fo), jnp.float32))
            rels.append(dict(w1=w1, b1=b1, w2=w2, b2=b2, bn=bn))
        params.append(dict(w_sl=w_sl, b_sl=b_sl, rel=rels))
    return params


# ---------------------------------------------------------------------------
# Pure-JAX reference (same bf16 cast points, f32 accumulation) for self-check.
# ---------------------------------------------------------------------------
def ref_forward(x_pad, ops, W, B, *, num_layers, num_relations, n_nodes, num_graphs):
    L, R, N, G = num_layers, num_relations, n_nodes, num_graphs

    def mm(a, b):
        return jnp.dot(a.astype(MATMUL_DTYPE), b.astype(MATMUL_DTYPE),
                       preferred_element_type=jnp.float32)

    outs = []
    for nb in range(x_pad.shape[0]):
        x, opsb = x_pad[nb], ops[nb]
        adjs = [opsb[r * N:(r + 1) * N, :] for r in range(R)]
        pool01 = opsb[R * N:R * N + G, :]
        for i in range(L):
            acc = mm(x, W[i, 0]) + B[i, 0]
            for r in range(R):
                h = x + mm(adjs[r], x)
                z = jnp.maximum(mm(h, W[i, 1 + 2 * r]) + B[i, 1 + 2 * r], 0.0)
                z = mm(z, W[i, 2 + 2 * r]) + B[i, 2 + 2 * r]
                acc = acc + z
            if i != L - 1:
                acc = jnp.maximum(acc, 0.0)
            x = acc
        counts = jnp.sum(pool01.astype(jnp.float32), axis=-1, keepdims=True)
        outs.append(mm(pool01, x) / jnp.maximum(counts, 1.0))
    return jnp.stack(outs)


# ---------------------------------------------------------------------------
if __name__ == "__main__":
    # Config: layer_type='R-GIN', num_relations=2, input_dim=8,
    # hidden_layers=[32,32], output_dim=8 -> 3 conv layers; eval mode;
    # last_layer_fa=False.
    input_dim, hidden_layers, output_dim = 8, (32, 32), 8
    num_relations = 2
    num_features = [input_dim] + list(hidden_layers) + [output_dim]
    num_layers = len(num_features) - 1

    num_batches = 4            # graph-batches per pallas_call (grid axis)
    num_graphs = 2             # graphs per batch
    nodes_per_graph = 8
    n_nodes = num_graphs * nodes_per_graph

    key = jax.random.PRNGKey(0)
    key, kp = jax.random.split(key)
    params = init_params(kp, num_features, num_relations)
    W, B = pack_params(params, num_relations)

    # Ring edges (both directions) per graph; relation type drawn per edge.
    src_list, dst_list = [], []
    for g in range(num_graphs):
        off = g * nodes_per_graph
        for i in range(nodes_per_graph):
            a, b = off + i, off + (i + 1) % nodes_per_graph
            src_list += [a, b]
            dst_list += [b, a]
    edge_index = jnp.array([src_list, dst_list], dtype=jnp.int32)
    n_edges = edge_index.shape[1]
    batch_vec = jnp.repeat(jnp.arange(num_graphs, dtype=jnp.int32), nodes_per_graph)

    xs, opss = [], []
    for _ in range(num_batches):
        key, kx, kt = jax.random.split(key, 3)
        x = jax.random.normal(kx, (n_nodes, input_dim), jnp.float32)
        edge_type = jax.random.randint(kt, (n_edges,), 0, num_relations)
        xs.append(jnp.pad(x, ((0, 0), (0, FPAD - input_dim))))
        opss.append(build_ops(edge_index, edge_type, batch_vec,
                              n_nodes, num_graphs, num_relations))
    x_pad = jnp.stack(xs)                                # [NB, N, 128] f32
    ops = jnp.stack(opss)                                # [NB, R*N+G, N] bf16

    fwd = jax.jit(functools.partial(
        gnn_forward, num_layers=num_layers, num_relations=num_relations,
        n_nodes=n_nodes, num_graphs=num_graphs, out_dim=output_dim))
    out = fwd(x_pad, ops, W, B)
    jax.block_until_ready(out)
    assert out.shape == (num_batches, num_graphs, output_dim)

    ref = ref_forward(x_pad, ops, W, B, num_layers=num_layers,
                      num_relations=num_relations, n_nodes=n_nodes,
                      num_graphs=num_graphs)[:, :, :output_dim]
    assert bool(jnp.allclose(out, ref, atol=1e-2, rtol=1e-2)), "kernel vs ref mismatch"
    print("KERNEL_OK")
</pallas_src>

<mosaic_0001>
module attributes {stable_mosaic.version = 11 : i64} {
  func.func @rgin_gnn_kernel(%arg0: i32, %arg1: memref<1x16x128xf32, #tpu.memory_space<vmem>>, %arg2: memref<1x34x16xbf16, #tpu.memory_space<vmem>>, %arg3: memref<3x5x128x128xbf16, #tpu.memory_space<vmem>>, %arg4: memref<3x5x1x128xf32, #tpu.memory_space<vmem>>, %arg5: memref<1x2x128xf32, #tpu.memory_space<vmem>>) attributes {dimension_semantics = [#tpu.dimension_semantics<parallel>], iteration_bounds = array<i64: 4>, scalar_prefetch = 0 : i64, scratch_operands = 0 : i64, tpu.core_type = #tpu.core_type<tc>, window_params = [{transform_indices = @transform_0, window_bounds = array<i64: 1, 16, 128>}, {transform_indices = @transform_1, window_bounds = array<i64: 1, 34, 16>}, {pipeline_mode = #tpu.pipeline_mode<synchronous>, transform_indices = @transform_2, window_bounds = array<i64: 3, 5, 128, 128>}, {pipeline_mode = #tpu.pipeline_mode<synchronous>, transform_indices = @transform_3, window_bounds = array<i64: 3, 5, 1, 128>}, {transform_indices = @transform_4, window_bounds = array<i64: 1, 2, 128>}]} {
    %c0 = arith.constant 0 : index
    %c0_0 = arith.constant 0 : index
    %c0_1 = arith.constant 0 : index
    %0 = vector.load %arg1[%c0, %c0_0, %c0_1] : memref<1x16x128xf32, #tpu.memory_space<vmem>>, vector<1x16x128xf32>
    %1 = vector.shape_cast %0 : vector<1x16x128xf32> to vector<16x128xf32>
    %c0_2 = arith.constant 0 : index
    %c0_3 = arith.constant 0 : index
    %c0_4 = arith.constant 0 : index
    %2 = vector.load %arg2[%c0_2, %c0_3, %c0_4] : memref<1x34x16xbf16, #tpu.memory_space<vmem>>, vector<1x16x16xbf16>
    %3 = vector.shape_cast %2 : vector<1x16x16xbf16> to vector<16x16xbf16>
    %c0_5 = arith.constant 0 : index
    %c16 = arith.constant 16 : index
    %c0_6 = arith.constant 0 : index
    %4 = vector.load %arg2[%c0_5, %c16, %c0_6] : memref<1x34x16xbf16, #tpu.memory_space<vmem>>, vector<1x16x16xbf16>
    %5 = vector.shape_cast %4 : vector<1x16x16xbf16> to vector<16x16xbf16>
    %c0_7 = arith.constant 0 : index
    %c32 = arith.constant 32 : index
    %c0_8 = arith.constant 0 : index
    %6 = vector.load %arg2[%c0_7, %c32, %c0_8] : memref<1x34x16xbf16, #tpu.memory_space<vmem>>, vector<1x2x16xbf16>
    %7 = vector.shape_cast %6 : vector<1x2x16xbf16> to vector<2x16xbf16>
    %8 = arith.truncf %1 : vector<16x128xf32> to vector<16x128xbf16>
    %c0_9 = arith.constant 0 : index
    %c0_10 = arith.constant 0 : index
    %c0_11 = arith.constant 0 : index
    %c0_12 = arith.constant 0 : index
    %9 = vector.load %arg3[%c0_9, %c0_10, %c0_11, %c0_12] : memref<3x5x128x128xbf16, #tpu.memory_space<vmem>>, vector<1x1x128x128xbf16>
    %10 = vector.shape_cast %9 : vector<1x1x128x128xbf16> to vector<128x128xbf16>
    %cst = arith.constant dense<0.000000e+00> : vector<16x128xf32>
    %11 = tpu.matmul %8, %10, %cst {dimension_numbers = #tpu.dot_dimension_numbers<[1], [0], [0], [1], [0, 0, 1, 1], [], []>} : vector<16x128xbf16>, vector<128x128xbf16>, vector<16x128xf32> -> vector<16x128xf32>
    %c0_13 = arith.constant 0 : index
    %c0_14 = arith.constant 0 : index
    %c0_15 = arith.constant 0 : index
    %c0_16 = arith.constant 0 : index
    %12 = vector.load %arg4[%c0_13, %c0_14, %c0_15, %c0_16] : memref<3x5x1x128xf32, #tpu.memory_space<vmem>>, vector<1x1x1x128xf32>
    %13 = vector.shape_cast %12 : vector<1x1x1x128xf32> to vector<1x128xf32>
    %14 = vector.broadcast %13 : vector<1x128xf32> to vector<16x128xf32>
    %15 = arith.addf %11, %14 : vector<16x128xf32>
    %cst_17 = arith.constant dense<0.000000e+00> : vector<16x128xf32>
    %16 = tpu.matmul %3, %8, %cst_17 {dimension_numbers = #tpu.dot_dimension_numbers<[1], [0], [0], [1], [0, 0, 1, 1], [], []>} : vector<16x16xbf16>, vector<16x128xbf16>, vector<16x128xf32> -> vector<16x128xf32>
    %17 = arith.addf %1, %16 : vector<16x128xf32>
    %18 = arith.truncf %17 : vector<16x128xf32> to vector<16x128xbf16>
    %c0_18 = arith.constant 0 : index
    %c1 = arith.constant 1 : index
    %c0_19 = arith.constant 0 : index
    %c0_20 = arith.constant 0 : index
    %19 = vector.load %arg3[%c0_18, %c1, %c0_19, %c0_20] : memref<3x5x128x128xbf16, #tpu.memory_space<vmem>>, vector<1x1x128x128xbf16>
    %20 = vector.shape_cast %19 : vector<1x1x128x128xbf16> to vector<128x128xbf16>
    %cst_21 = arith.constant dense<0.000000e+00> : vector<16x128xf32>
    %21 = tpu.matmul %18, %20, %cst_21 {dimension_numbers = #tpu.dot_dimension_numbers<[1], [0], [0], [1], [0, 0, 1, 1], [], []>} : vector<16x128xbf16>, vector<128x128xbf16>, vector<16x128xf32> -> vector<16x128xf32>
    %c0_22 = arith.constant 0 : index
    %c1_23 = arith.constant 1 : index
    %c0_24 = arith.constant 0 : index
    %c0_25 = arith.constant 0 : index
    %22 = vector.load %arg4[%c0_22, %c1_23, %c0_24, %c0_25] : memref<3x5x1x128xf32, #tpu.memory_space<vmem>>, vector<1x1x1x128xf32>
    %23 = vector.shape_cast %22 : vector<1x1x1x128xf32> to vector<1x128xf32>
    %24 = vector.broadcast %23 : vector<1x128xf32> to vector<16x128xf32>
    %25 = arith.addf %21, %24 : vector<16x128xf32>
    %cst_26 = arith.constant 0.000000e+00 : f32
    %26 = vector.broadcast %cst_26 : f32 to vector<16x128xf32>
    %27 = arith.maximumf %25, %26 : vector<16x128xf32>
    %28 = arith.truncf %27 : vector<16x128xf32> to vector<16x128xbf16>
    %c0_27 = arith.constant 0 : index
    %c2 = arith.constant 2 : index
    %c0_28 = arith.constant 0 : index
    %c0_29 = arith.constant 0 : index
    %29 = vector.load %arg3[%c0_27, %c2, %c0_28, %c0_29] : memref<3x5x128x128xbf16, #tpu.memory_space<vmem>>, vector<1x1x128x128xbf16>
    %30 = vector.shape_cast %29 : vector<1x1x128x128xbf16> to vector<128x128xbf16>
    %cst_30 = arith.constant dense<0.000000e+00> : vector<16x128xf32>
    %31 = tpu.matmul %28, %30, %cst_30 {dimension_numbers = #tpu.dot_dimension_numbers<[1], [0], [0], [1], [0, 0, 1, 1], [], []>} : vector<16x128xbf16>, vector<128x128xbf16>, vector<16x128xf32> -> vector<16x128xf32>
    %c0_31 = arith.constant 0 : index
    %c2_32 = arith.constant 2 : index
    %c0_33 = arith.constant 0 : index
    %c0_34 = arith.constant 0 : index
    %32 = vector.load %arg4[%c0_31, %c2_32, %c0_33, %c0_34] : memref<3x5x1x128xf32, #tpu.memory_space<vmem>>, vector<1x1x1x128xf32>
    %33 = vector.shape_cast %32 : vector<1x1x1x128xf32> to vector<1x128xf32>
    %34 = vector.broadcast %33 : vector<1x128xf32> to vector<16x128xf32>
    %35 = arith.addf %31, %34 : vector<16x128xf32>
    %36 = arith.addf %15, %35 : vector<16x128xf32>
    %cst_35 = arith.constant dense<0.000000e+00> : vector<16x128xf32>
    %37 = tpu.matmul %5, %8, %cst_35 {dimension_numbers = #tpu.dot_dimension_numbers<[1], [0], [0], [1], [0, 0, 1, 1], [], []>} : vector<16x16xbf16>, vector<16x128xbf16>, vector<16x128xf32> -> vector<16x128xf32>
    %38 = arith.addf %1, %37 : vector<16x128xf32>
    %39 = arith.truncf %38 : vector<16x128xf32> to vector<16x128xbf16>
    %c0_36 = arith.constant 0 : index
    %c3 = arith.constant 3 : index
    %c0_37 = arith.constant 0 : index
    %c0_38 = arith.constant 0 : index
    %40 = vector.load %arg3[%c0_36, %c3, %c0_37, %c0_38] : memref<3x5x128x128xbf16, #tpu.memory_space<vmem>>, vector<1x1x128x128xbf16>
    %41 = vector.shape_cast %40 : vector<1x1x128x128xbf16> to vector<128x128xbf16>
    %cst_39 = arith.constant dense<0.000000e+00> : vector<16x128xf32>
    %42 = tpu.matmul %39, %41, %cst_39 {dimension_numbers = #tpu.dot_dimension_numbers<[1], [0], [0], [1], [0, 0, 1, 1], [], []>} : vector<16x128xbf16>, vector<128x128xbf16>, vector<16x128xf32> -> vector<16x128xf32>
    %c0_40 = arith.constant 0 : index
    %c3_41 = arith.constant 3 : index
    %c0_42 = arith.constant 0 : index
    %c0_43 = arith.constant 0 : index
    %43 = vector.load %arg4[%c0_40, %c3_41, %c0_42, %c0_43] : memref<3x5x1x128xf32, #tpu.memory_space<vmem>>, vector<1x1x1x128xf32>
    %44 = vector.shape_cast %43 : vector<1x1x1x128xf32> to vector<1x128xf32>
    %45 = vector.broadcast %44 : vector<1x128xf32> to vector<16x128xf32>
    %46 = arith.addf %42, %45 : vector<16x128xf32>
    %cst_44 = arith.constant 0.000000e+00 : f32
    %47 = vector.broadcast %cst_44 : f32 to vector<16x128xf32>
    %48 = arith.maximumf %46, %47 : vector<16x128xf32>
    %49 = arith.truncf %48 : vector<16x128xf32> to vector<16x128xbf16>
    %c0_45 = arith.constant 0 : index
    %c4 = arith.constant 4 : index
    %c0_46 = arith.constant 0 : index
    %c0_47 = arith.constant 0 : index
    %50 = vector.load %arg3[%c0_45, %c4, %c0_46, %c0_47] : memref<3x5x128x128xbf16, #tpu.memory_space<vmem>>, vector<1x1x128x128xbf16>
    %51 = vector.shape_cast %50 : vector<1x1x128x128xbf16> to vector<128x128xbf16>
    %cst_48 = arith.constant dense<0.000000e+00> : vector<16x128xf32>
    %52 = tpu.matmul %49, %51, %cst_48 {dimension_numbers = #tpu.dot_dimension_numbers<[1], [0], [0], [1], [0, 0, 1, 1], [], []>} : vector<16x128xbf16>, vector<128x128xbf16>, vector<16x128xf32> -> vector<16x128xf32>
    %c0_49 = arith.constant 0 : index
    %c4_50 = arith.constant 4 : index
    %c0_51 = arith.constant 0 : index
    %c0_52 = arith.constant 0 : index
    %53 = vector.load %arg4[%c0_49, %c4_50, %c0_51, %c0_52] : memref<3x5x1x128xf32, #tpu.memory_space<vmem>>, vector<1x1x1x128xf32>
    %54 = vector.shape_cast %53 : vector<1x1x1x128xf32> to vector<1x128xf32>
    %55 = vector.broadcast %54 : vector<1x128xf32> to vector<16x128xf32>
    %56 = arith.addf %52, %55 : vector<16x128xf32>
    %57 = arith.addf %36, %56 : vector<16x128xf32>
    %cst_53 = arith.constant 0.000000e+00 : f32
    %58 = vector.broadcast %cst_53 : f32 to vector<16x128xf32>
    %59 = arith.maximumf %57, %58 : vector<16x128xf32>
    %60 = arith.truncf %59 : vector<16x128xf32> to vector<16x128xbf16>
    %c1_54 = arith.constant 1 : index
    %c0_55 = arith.constant 0 : index
    %c0_56 = arith.constant 0 : index
    %c0_57 = arith.constant 0 : index
    %61 = vector.load %arg3[%c1_54, %c0_55, %c0_56, %c0_57] : memref<3x5x128x128xbf16, #tpu.memory_space<vmem>>, vector<1x1x128x128xbf16>
    %62 = vector.shape_cast %61 : vector<1x1x128x128xbf16> to vector<128x128xbf16>
    %cst_58 = arith.constant dense<0.000000e+00> : vector<16x128xf32>
    %63 = tpu.matmul %60, %62, %cst_58 {dimension_numbers = #tpu.dot_dimension_numbers<[1], [0], [0], [1], [0, 0, 1, 1], [], []>} : vector<16x128xbf16>, vector<128x128xbf16>, vector<16x128xf32> -> vector<16x128xf32>
    %c1_59 = arith.constant 1 : index
    %c0_60 = arith.constant 0 : index
    %c0_61 = arith.constant 0 : index
    %c0_62 = arith.constant 0 : index
    %64 = vector.load %arg4[%c1_59, %c0_60, %c0_61, %c0_62] : memref<3x5x1x128xf32, #tpu.memory_space<vmem>>, vector<1x1x1x128xf32>
    %65 = vector.shape_cast %64 : vector<1x1x1x128xf32> to vector<1x128xf32>
    %66 = vector.broadcast %65 : vector<1x128xf32> to vector<16x128xf32>
    %67 = arith.addf %63, %66 : vector<16x128xf32>
    %cst_63 = arith.constant dense<0.000000e+00> : vector<16x128xf32>
    %68 = tpu.matmul %3, %60, %cst_63 {dimension_numbers = #tpu.dot_dimension_numbers<[1], [0], [0], [1], [0, 0, 1, 1], [], []>} : vector<16x16xbf16>, vector<16x128xbf16>, vector<16x128xf32> -> vector<16x128xf32>
    %69 = arith.addf %59, %68 : vector<16x128xf32>
    %70 = arith.truncf %69 : vector<16x128xf32> to vector<16x128xbf16>
    %c1_64 = arith.constant 1 : index
    %c1_65 = arith.constant 1 : index
    %c0_66 = arith.constant 0 : index
    %c0_67 = arith.constant 0 : index
    %71 = vector.load %arg3[%c1_64, %c1_65, %c0_66, %c0_67] : memref<3x5x128x128xbf16, #tpu.memory_space<vmem>>, vector<1x1x128x128xbf16>
    %72 = vector.shape_cast %71 : vector<1x1x128x128xbf16> to vector<128x128xbf16>
    %cst_68 = arith.constant dense<0.000000e+00> : vector<16x128xf32>
    %73 = tpu.matmul %70, %72, %cst_68 {dimension_numbers = #tpu.dot_dimension_numbers<[1], [0], [0], [1], [0, 0, 1, 1], [], []>} : vector<16x128xbf16>, vector<128x128xbf16>, vector<16x128xf32> -> vector<16x128xf32>
    %c1_69 = arith.constant 1 : index
    %c1_70 = arith.constant 1 : index
    %c0_71 = arith.constant 0 : index
    %c0_72 = arith.constant 0 : index
    %74 = vector.load %arg4[%c1_69, %c1_70, %c0_71, %c0_72] : memref<3x5x1x128xf32, #tpu.memory_space<vmem>>, vector<1x1x1x128xf32>
    %75 = vector.shape_cast %74 : vector<1x1x1x128xf32> to vector<1x128xf32>
    %76 = vector.broadcast %75 : vector<1x128xf32> to vector<16x128xf32>
    %77 = arith.addf %73, %76 : vector<16x128xf32>
    %cst_73 = arith.constant 0.000000e+00 : f32
    %78 = vector.broadcast %cst_73 : f32 to vector<16x128xf32>
    %79 = arith.maximumf %77, %78 : vector<16x128xf32>
    %80 = arith.truncf %79 : vector<16x128xf32> to vector<16x128xbf16>
    %c1_74 = arith.constant 1 : index
    %c2_75 = arith.constant 2 : index
    %c0_76 = arith.constant 0 : index
    %c0_77 = arith.constant 0 : index
    %81 = vector.load %arg3[%c1_74, %c2_75, %c0_76, %c0_77] : memref<3x5x128x128xbf16, #tpu.memory_space<vmem>>, vector<1x1x128x128xbf16>
    %82 = vector.shape_cast %81 : vector<1x1x128x128xbf16> to vector<128x128xbf16>
    %cst_78 = arith.constant dense<0.000000e+00> : vector<16x128xf32>
    %83 = tpu.matmul %80, %82, %cst_78 {dimension_numbers = #tpu.dot_dimension_numbers<[1], [0], [0], [1], [0, 0, 1, 1], [], []>} : vector<16x128xbf16>, vector<128x128xbf16>, vector<16x128xf32> -> vector<16x128xf32>
    %c1_79 = arith.constant 1 : index
    %c2_80 = arith.constant 2 : index
    %c0_81 = arith.constant 0 : index
    %c0_82 = arith.constant 0 : index
    %84 = vector.load %arg4[%c1_79, %c2_80, %c0_81, %c0_82] : memref<3x5x1x128xf32, #tpu.memory_space<vmem>>, vector<1x1x1x128xf32>
    %85 = vector.shape_cast %84 : vector<1x1x1x128xf32> to vector<1x128xf32>
    %86 = vector.broadcast %85 : vector<1x128xf32> to vector<16x128xf32>
    %87 = arith.addf %83, %86 : vector<16x128xf32>
    %88 = arith.addf %67, %87 : vector<16x128xf32>
    %cst_83 = arith.constant dense<0.000000e+00> : vector<16x128xf32>
    %89 = tpu.matmul %5, %60, %cst_83 {dimension_numbers = #tpu.dot_dimension_numbers<[1], [0], [0], [1], [0, 0, 1, 1], [], []>} : vector<16x16xbf16>, vector<16x128xbf16>, vector<16x128xf32> -> vector<16x128xf32>
    %90 = arith.addf %59, %89 : vector<16x128xf32>
    %91 = arith.truncf %90 : vector<16x128xf32> to vector<16x128xbf16>
    %c1_84 = arith.constant 1 : index
    %c3_85 = arith.constant 3 : index
    %c0_86 = arith.constant 0 : index
    %c0_87 = arith.constant 0 : index
    %92 = vector.load %arg3[%c1_84, %c3_85, %c0_86, %c0_87] : memref<3x5x128x128xbf16, #tpu.memory_space<vmem>>, vector<1x1x128x128xbf16>
    %93 = vector.shape_cast %92 : vector<1x1x128x128xbf16> to vector<128x128xbf16>
    %cst_88 = arith.constant dense<0.000000e+00> : vector<16x128xf32>
    %94 = tpu.matmul %91, %93, %cst_88 {dimension_numbers = #tpu.dot_dimension_numbers<[1], [0], [0], [1], [0, 0, 1, 1], [], []>} : vector<16x128xbf16>, vector<128x128xbf16>, vector<16x128xf32> -> vector<16x128xf32>
    %c1_89 = arith.constant 1 : index
    %c3_90 = arith.constant 3 : index
    %c0_91 = arith.constant 0 : index
    %c0_92 = arith.constant 0 : index
    %95 = vector.load %arg4[%c1_89, %c3_90, %c0_91, %c0_92] : memref<3x5x1x128xf32, #tpu.memory_space<vmem>>, vector<1x1x1x128xf32>
    %96 = vector.shape_cast %95 : vector<1x1x1x128xf32> to vector<1x128xf32>
    %97 = vector.broadcast %96 : vector<1x128xf32> to vector<16x128xf32>
    %98 = arith.addf %94, %97 : vector<16x128xf32>
    %cst_93 = arith.constant 0.000000e+00 : f32
    %99 = vector.broadcast %cst_93 : f32 to vector<16x128xf32>
    %100 = arith.maximumf %98, %99 : vector<16x128xf32>
    %101 = arith.truncf %100 : vector<16x128xf32> to vector<16x128xbf16>
    %c1_94 = arith.constant 1 : index
    %c4_95 = arith.constant 4 : index
    %c0_96 = arith.constant 0 : index
    %c0_97 = arith.constant 0 : index
    %102 = vector.load %arg3[%c1_94, %c4_95, %c0_96, %c0_97] : memref<3x5x128x128xbf16, #tpu.memory_space<vmem>>, vector<1x1x128x128xbf16>
    %103 = vector.shape_cast %102 : vector<1x1x128x128xbf16> to vector<128x128xbf16>
    %cst_98 = arith.constant dense<0.000000e+00> : vector<16x128xf32>
    %104 = tpu.matmul %101, %103, %cst_98 {dimension_numbers = #tpu.dot_dimension_numbers<[1], [0], [0], [1], [0, 0, 1, 1], [], []>} : vector<16x128xbf16>, vector<128x128xbf16>, vector<16x128xf32> -> vector<16x128xf32>
    %c1_99 = arith.constant 1 : index
    %c4_100 = arith.constant 4 : index
    %c0_101 = arith.constant 0 : index
    %c0_102 = arith.constant 0 : index
    %105 = vector.load %arg4[%c1_99, %c4_100, %c0_101, %c0_102] : memref<3x5x1x128xf32, #tpu.memory_space<vmem>>, vector<1x1x1x128xf32>
    %106 = vector.shape_cast %105 : vector<1x1x1x128xf32> to vector<1x128xf32>
    %107 = vector.broadcast %106 : vector<1x128xf32> to vector<16x128xf32>
    %108 = arith.addf %104, %107 : vector<16x128xf32>
    %109 = arith.addf %88, %108 : vector<16x128xf32>
    %cst_103 = arith.constant 0.000000e+00 : f32
    %110 = vector.broadcast %cst_103 : f32 to vector<16x128xf32>
    %111 = arith.maximumf %109, %110 : vector<16x128xf32>
    %112 = arith.truncf %111 : vector<16x128xf32> to vector<16x128xbf16>
    %c2_104 = arith.constant 2 : index
    %c0_105 = arith.constant 0 : index
    %c0_106 = arith.constant 0 : index
    %c0_107 = arith.constant 0 : index
    %113 = vector.load %arg3[%c2_104, %c0_105, %c0_106, %c0_107] : memref<3x5x128x128xbf16, #tpu.memory_space<vmem>>, vector<1x1x128x128xbf16>
    %114 = vector.shape_cast %113 : vector<1x1x128x128xbf16> to vector<128x128xbf16>
    %cst_108 = arith.constant dense<0.000000e+00> : vector<16x128xf32>
    %115 = tpu.matmul %112, %114, %cst_108 {dimension_numbers = #tpu.dot_dimension_numbers<[1], [0], [0], [1], [0, 0, 1, 1], [], []>} : vector<16x128xbf16>, vector<128x128xbf16>, vector<16x128xf32> -> vector<16x128xf32>
    %c2_109 = arith.constant 2 : index
    %c0_110 = arith.constant 0 : index
    %c0_111 = arith.constant 0 : index
    %c0_112 = arith.constant 0 : index
    %116 = vector.load %arg4[%c2_109, %c0_110, %c0_111, %c0_112] : memref<3x5x1x128xf32, #tpu.memory_space<vmem>>, vector<1x1x1x128xf32>
    %117 = vector.shape_cast %116 : vector<1x1x1x128xf32> to vector<1x128xf32>
    %118 = vector.broadcast %117 : vector<1x128xf32> to vector<16x128xf32>
    %119 = arith.addf %115, %118 : vector<16x128xf32>
    %cst_113 = arith.constant dense<0.000000e+00> : vector<16x128xf32>
    %120 = tpu.matmul %3, %112, %cst_113 {dimension_numbers = #tpu.dot_dimension_numbers<[1], [0], [0], [1], [0, 0, 1, 1], [], []>} : vector<16x16xbf16>, vector<16x128xbf16>, vector<16x128xf32> -> vector<16x128xf32>
    %121 = arith.addf %111, %120 : vector<16x128xf32>
    %122 = arith.truncf %121 : vector<16x128xf32> to vector<16x128xbf16>
    %c2_114 = arith.constant 2 : index
    %c1_115 = arith.constant 1 : index
    %c0_116 = arith.constant 0 : index
    %c0_117 = arith.constant 0 : index
    %123 = vector.load %arg3[%c2_114, %c1_115, %c0_116, %c0_117] : memref<3x5x128x128xbf16, #tpu.memory_space<vmem>>, vector<1x1x128x128xbf16>
    %124 = vector.shape_cast %123 : vector<1x1x128x128xbf16> to vector<128x128xbf16>
    %cst_118 = arith.constant dense<0.000000e+00> : vector<16x128xf32>
    %125 = tpu.matmul %122, %124, %cst_118 {dimension_numbers = #tpu.dot_dimension_numbers<[1], [0], [0], [1], [0, 0, 1, 1], [], []>} : vector<16x128xbf16>, vector<128x128xbf16>, vector<16x128xf32> -> vector<16x128xf32>
    %c2_119 = arith.constant 2 : index
    %c1_120 = arith.constant 1 : index
    %c0_121 = arith.constant 0 : index
    %c0_122 = arith.constant 0 : index
    %126 = vector.load %arg4[%c2_119, %c1_120, %c0_121, %c0_122] : memref<3x5x1x128xf32, #tpu.memory_space<vmem>>, vector<1x1x1x128xf32>
    %127 = vector.shape_cast %126 : vector<1x1x1x128xf32> to vector<1x128xf32>
    %128 = vector.broadcast %127 : vector<1x128xf32> to vector<16x128xf32>
    %129 = arith.addf %125, %128 : vector<16x128xf32>
    %cst_123 = arith.constant 0.000000e+00 : f32
    %130 = vector.broadcast %cst_123 : f32 to vector<16x128xf32>
    %131 = arith.maximumf %129, %130 : vector<16x128xf32>
    %132 = arith.truncf %131 : vector<16x128xf32> to vector<16x128xbf16>
    %c2_124 = arith.constant 2 : index
    %c2_125 = arith.constant 2 : index
    %c0_126 = arith.constant 0 : index
    %c0_127 = arith.constant 0 : index
    %133 = vector.load %arg3[%c2_124, %c2_125, %c0_126, %c0_127] : memref<3x5x128x128xbf16, #tpu.memory_space<vmem>>, vector<1x1x128x128xbf16>
    %134 = vector.shape_cast %133 : vector<1x1x128x128xbf16> to vector<128x128xbf16>
    %cst_128 = arith.constant dense<0.000000e+00> : vector<16x128xf32>
    %135 = tpu.matmul %132, %134, %cst_128 {dimension_numbers = #tpu.dot_dimension_numbers<[1], [0], [0], [1], [0, 0, 1, 1], [], []>} : vector<16x128xbf16>, vector<128x128xbf16>, vector<16x128xf32> -> vector<16x128xf32>
    %c2_129 = arith.constant 2 : index
    %c2_130 = arith.constant 2 : index
    %c0_131 = arith.constant 0 : index
    %c0_132 = arith.constant 0 : index
    %136 = vector.load %arg4[%c2_129, %c2_130, %c0_131, %c0_132] : memref<3x5x1x128xf32, #tpu.memory_space<vmem>>, vector<1x1x1x128xf32>
    %137 = vector.shape_cast %136 : vector<1x1x1x128xf32> to vector<1x128xf32>
    %138 = vector.broadcast %137 : vector<1x128xf32> to vector<16x128xf32>
    %139 = arith.addf %135, %138 : vector<16x128xf32>
    %140 = arith.addf %119, %139 : vector<16x128xf32>
    %cst_133 = arith.constant dense<0.000000e+00> : vector<16x128xf32>
    %141 = tpu.matmul %5, %112, %cst_133 {dimension_numbers = #tpu.dot_dimension_numbers<[1], [0], [0], [1], [0, 0, 1, 1], [], []>} : vector<16x16xbf16>, vector<16x128xbf16>, vector<16x128xf32> -> vector<16x128xf32>
    %142 = arith.addf %111, %141 : vector<16x128xf32>
    %143 = arith.truncf %142 : vector<16x128xf32> to vector<16x128xbf16>
    %c2_134 = arith.constant 2 : index
    %c3_135 = arith.constant 3 : index
    %c0_136 = arith.constant 0 : index
    %c0_137 = arith.constant 0 : index
    %144 = vector.load %arg3[%c2_134, %c3_135, %c0_136, %c0_137] : memref<3x5x128x128xbf16, #tpu.memory_space<vmem>>, vector<1x1x128x128xbf16>
    %145 = vector.shape_cast %144 : vector<1x1x128x128xbf16> to vector<128x128xbf16>
    %cst_138 = arith.constant dense<0.000000e+00> : vector<16x128xf32>
    %146 = tpu.matmul %143, %145, %cst_138 {dimension_numbers = #tpu.dot_dimension_numbers<[1], [0], [0], [1], [0, 0, 1, 1], [], []>} : vector<16x128xbf16>, vector<128x128xbf16>, vector<16x128xf32> -> vector<16x128xf32>
    %c2_139 = arith.constant 2 : index
    %c3_140 = arith.constant 3 : index
    %c0_141 = arith.constant 0 : index
    %c0_142 = arith.constant 0 : index
    %147 = vector.load %arg4[%c2_139, %c3_140, %c0_141, %c0_142] : memref<3x5x1x128xf32, #tpu.memory_space<vmem>>, vector<1x1x1x128xf32>
    %148 = vector.shape_cast %147 : vector<1x1x1x128xf32> to vector<1x128xf32>
    %149 = vector.broadcast %148 : vector<1x128xf32> to vector<16x128xf32>
    %150 = arith.addf %146, %149 : vector<16x128xf32>
    %cst_143 = arith.constant 0.000000e+00 : f32
    %151 = vector.broadcast %cst_143 : f32 to vector<16x128xf32>
    %152 = arith.maximumf %150, %151 : vector<16x128xf32>
    %153 = arith.truncf %152 : vector<16x128xf32> to vector<16x128xbf16>
    %c2_144 = arith.constant 2 : index
    %c4_145 = arith.constant 4 : index
    %c0_146 = arith.constant 0 : index
    %c0_147 = arith.constant 0 : index
    %154 = vector.load %arg3[%c2_144, %c4_145, %c0_146, %c0_147] : memref<3x5x128x128xbf16, #tpu.memory_space<vmem>>, vector<1x1x128x128xbf16>
    %155 = vector.shape_cast %154 : vector<1x1x128x128xbf16> to vector<128x128xbf16>
    %cst_148 = arith.constant dense<0.000000e+00> : vector<16x128xf32>
    %156 = tpu.matmul %153, %155, %cst_148 {dimension_numbers = #tpu.dot_dimension_numbers<[1], [0], [0], [1], [0, 0, 1, 1], [], []>} : vector<16x128xbf16>, vector<128x128xbf16>, vector<16x128xf32> -> vector<16x128xf32>
    %c2_149 = arith.constant 2 : index
    %c4_150 = arith.constant 4 : index
    %c0_151 = arith.constant 0 : index
    %c0_152 = arith.constant 0 : index
    %157 = vector.load %arg4[%c2_149, %c4_150, %c0_151, %c0_152] : memref<3x5x1x128xf32, #tpu.memory_space<vmem>>, vector<1x1x1x128xf32>
    %158 = vector.shape_cast %157 : vector<1x1x1x128xf32> to vector<1x128xf32>
    %159 = vector.broadcast %158 : vector<1x128xf32> to vector<16x128xf32>
    %160 = arith.addf %156, %159 : vector<16x128xf32>
    %161 = arith.addf %140, %160 : vector<16x128xf32>
    %162 = arith.extf %7 : vector<2x16xbf16> to vector<2x16xf32>
    %cst_153 = arith.constant dense<0.000000e+00> : vector<2xf32>
    %163 = vector.multi_reduction <add>, %162, %cst_153 [1] : vector<2x16xf32> to vector<2xf32>
    %164 = vector.shape_cast %163 : vector<2xf32> to vector<2x1xf32>
    %165 = arith.truncf %161 : vector<16x128xf32> to vector<16x128xbf16>
    %cst_154 = arith.constant dense<0.000000e+00> : vector<2x128xf32>
    %166 = tpu.matmul %7, %165, %cst_154 {dimension_numbers = #tpu.dot_dimension_numbers<[1], [0], [0], [1], [0, 0, 1, 1], [], []>} : vector<2x16xbf16>, vector<16x128xbf16>, vector<2x128xf32> -> vector<2x128xf32>
    %cst_155 = arith.constant 1.000000e+00 : f32
    %167 = vector.broadcast %cst_155 : f32 to vector<2x1xf32>
    %168 = arith.maximumf %164, %167 : vector<2x1xf32>
    %169 = vector.broadcast %168 : vector<2x1xf32> to vector<2x128xf32>
    %170 = arith.divf %166, %169 : vector<2x128xf32>
    %c0_156 = arith.constant 0 : index
    %c0_157 = arith.constant 0 : index
    %c0_158 = arith.constant 0 : index
    %171 = vector.load %arg5[%c0_156, %c0_157, %c0_158] : memref<1x2x128xf32, #tpu.memory_space<vmem>>, vector<1x2x128xf32>
    %172 = vector.shape_cast %171 : vector<1x2x128xf32> to vector<2x128xf32>
    %173 = vector.shape_cast %170 : vector<2x128xf32> to vector<1x2x128xf32>
    tpu.vector_store %arg5[%c0_156, %c0_157, %c0_158], %173 {strides = array<i32>} : memref<1x2x128xf32, #tpu.memory_space<vmem>>, vector<1x2x128xf32>,
    return
  }
  func.func @transform_0(%arg0: i32) -> (i32, i32, i32) {
    %c0_i32 = arith.constant 0 : i32
    %c0_i32_0 = arith.constant 0 : i32
    %c0_i32_1 = arith.constant 0 : i32
    return %arg0, %c0_i32, %c0_i32_0 : i32, i32, i32
  }
  func.func @transform_1(%arg0: i32) -> (i32, i32, i32) {
    %c0_i32 = arith.constant 0 : i32
    %c0_i32_0 = arith.constant 0 : i32
    %c0_i32_1 = arith.constant 0 : i32
    return %arg0, %c0_i32, %c0_i32_0 : i32, i32, i32
  }
  func.func @transform_2(%arg0: i32) -> (i32, i32, i32, i32) {
    %c0_i32 = arith.constant 0 : i32
    %c0_i32_0 = arith.constant 0 : i32
    %c0_i32_1 = arith.constant 0 : i32
    %c0_i32_2 = arith.constant 0 : i32
    %c0_i32_3 = arith.constant 0 : i32
    return %c0_i32, %c0_i32_0, %c0_i32_1, %c0_i32_2 : i32, i32, i32, i32
  }
  func.func @transform_3(%arg0: i32) -> (i32, i32, i32, i32) {
    %c0_i32 = arith.constant 0 : i32
    %c0_i32_0 = arith.constant 0 : i32
    %c0_i32_1 = arith.constant 0 : i32
    %c0_i32_2 = arith.constant 0 : i32
    %c0_i32_3 = arith.constant 0 : i32
    return %c0_i32, %c0_i32_0, %c0_i32_1, %c0_i32_2 : i32, i32, i32, i32
  }
  func.func @transform_4(%arg0: i32) -> (i32, i32, i32) {
    %c0_i32 = arith.constant 0 : i32
    %c0_i32_0 = arith.constant 0 : i32
    %c0_i32_1 = arith.constant 0 : i32
    return %arg0, %c0_i32, %c0_i32_0 : i32, i32, i32
  }
}

</mosaic_0001>

<llo_original>
// kernel: gnn_forward.1
$region0: #{gnn_forward.1}
  #allocation0 [shape = 'u32[]', space=smem, size = 0x4, offset = 0x4, fixed_abs, tag = 'smem constant byte address 0x4 - core index']
  #allocation1 [shape = 'u32[72,128]{1,0:T(1,128)}', space=vmem, size = 0x9000, scoped, tag = 'internal scratch']
  %s0 = inlined_call_operand.vmem [shape: f32[4,16,128], index: 0, kind: input, shape index: {}]
  %s1 = inlined_call_operand.vmem [shape: bf16[4,34,16], index: 1, kind: input, shape index: {}]
  %s2 = inlined_call_operand.hbm [shape: bf16[3,5,128,128], index: 2, kind: input, shape index: {}]
  %s3 = inlined_call_operand.vmem [shape: f32[3,5,1,128], index: 3, kind: input, shape index: {}]
  %s4 = inlined_call_operand.hbm [shape: f32[4,2,128], index: 4, kind: output, shape index: {}]
  %s5 = sld [smem:[#allocation0]]
  $region53: #{gnn_forward.1} parent=0
    _
  %s7 = ssub.s32 1, %s5
  %s8 = scalar_select 0, %s7, %s5
  $region1: #{gnn_forward.1} parent=0
    #allocation2 [shape = 'u8[491520]{0}', space=vmem, size = 0x78000, scoped, tag = 'input window, operand 2, single buffered']
    #allocation3 [shape = 's32[2]{0}', space=sflag, size = 0x8, scoped, tag = 'scoped memory for gnn_forward.1']
    #allocation4 [shape = 's32[2]{0}', space=sflag, size = 0x8, scoped, tag = 'scoped memory for gnn_forward.1']
    #allocation5 [shape = 'u8[2048]{0}', space=vmem, size = 0x800, scoped, tag = 'output window, operand 0']
    %9 = vsyncpa [#allocation3], 0
    %10 = vsyncpa [#allocation4], 0
    %s11 = scalar_lea.sflag [#allocation4], 1
    %12 = vsyncpa %s11, 0
    loop: start=0, step=1, limit=6
    $region2: #{gnn_forward.1} parent=1 // loop_pre_header
      _
    $region3: #{gnn_forward.1} parent=1 // loop_header
      %s14 = sphi 0, %s18
      %p15 = scmp.ge.s32.totalorder %s14, 6
      %s24 = sphi 0, %s26
      %s27 = sphi 0, %s24
      %s28 = sphi 0, %s27
      %s44 = sphi 0, %s28
      %s50 = sphi 0, %s52
      %s53 = sphi 0, %s50
      %s54 = sphi 0, %s53
      %s70 = sphi 0, %s54
      %s74 = sphi 0, %s74
      %s76 = sphi 0, %s74
      %s77 = sphi 0, %s76
      %s91 = sphi 0, %s77
      %s95 = sphi 0, %s95
      %s97 = sphi 0, %s95
      %s98 = sphi 0, %s97
      %s112 = sphi 0, %s98
      %s118 = sphi 0, %s120
      %s121 = sphi 0, %s118
      %s122 = sphi 0, %s121
      %s138 = sphi 0, %s122
    $region4: #{gnn_forward.1} parent=1 // loop_header_branch
      %17 = sbr.rel (%p15) target = $region8
    $region5: #{gnn_forward.1} parent=1 // loop_body
      %s19 = ssub.s32 %s14, 1
      %s20 = ssub.s32 %s14, 2
      %s21 = sadd.s32 %s14, 1
      %s22 = ssub.s32 %s14, %s21
      %p23 = scmp.eq.s32.totalorder %s22, 0
      %s25 = sadd.s32 %s24, 1
      %s26 = scalar_select %p23, %s24, %s25
      %p29 = pneg %p23
      %p30 = scmp.eq.s32.totalorder %s14, 3
      %p31 = por %p29, %p30
      %p32 = scmp.ne.s32.totalorder %s24, %s27
      %p33 = scmp.eq.s32.totalorder %s14, 0
      %p34 = por %p32, %p33
      %p35 = scmp.ne.s32.totalorder %s24, %s27
      %p36 = scmp.eq.s32.totalorder %s19, 3
      %p37 = por %p35, %p36
      %p38 = scmp.ne.s32.totalorder %s27, %s28
      %p39 = scmp.eq.s32.totalorder %s19, 0
      %p40 = por %p38, %p39
      %p41 = scmp.ne.s32.totalorder %s27, %s28
      %p42 = scmp.eq.s32.totalorder %s20, 3
      %p43 = por %p41, %p42
      %p45 = scmp.ne.s32.totalorder %s28, %s44
      %p46 = scmp.eq.s32.totalorder %s20, 0
      %p47 = por %p45, %p46
      %s48 = ssub.s32 %s14, %s21
      %p49 = scmp.eq.s32.totalorder %s48, 0
      %s51 = sadd.s32 %s50, 1
      %s52 = scalar_select %p49, %s50, %s51
      %p55 = pneg %p49
      %p56 = scmp.eq.s32.totalorder %s14, 3
      %p57 = por %p55, %p56
      %p58 = scmp.ne.s32.totalorder %s50, %s53
      %p59 = scmp.eq.s32.totalorder %s14, 0
      %p60 = por %p58, %p59
      %p61 = scmp.ne.s32.totalorder %s50, %s53
      %p62 = scmp.eq.s32.totalorder %s19, 3
      %p63 = por %p61, %p62
      %p64 = scmp.ne.s32.totalorder %s53, %s54
      %p65 = scmp.eq.s32.totalorder %s19, 0
      %p66 = por %p64, %p65
      %p67 = scmp.ne.s32.totalorder %s53, %s54
      %p68 = scmp.eq.s32.totalorder %s20, 3
      %p69 = por %p67, %p68
      %p71 = scmp.ne.s32.totalorder %s54, %s70
      %p72 = scmp.eq.s32.totalorder %s20, 0
      %p73 = por %p71, %p72
      %s75 = sadd.s32 %s74, 1
      %p78 = scmp.eq.s32.totalorder %s14, 3
      %p79 = scmp.ne.s32.totalorder %s74, %s76
      %p80 = scmp.eq.s32.totalorder %s14, 0
      %p81 = por %p79, %p80
      %p82 = scmp.ne.s32.totalorder %s74, %s76
      %p83 = scmp.eq.s32.totalorder %s19, 3
      %p84 = por %p82, %p83
      %p85 = scmp.ne.s32.totalorder %s76, %s77
      %p86 = scmp.eq.s32.totalorder %s19, 0
      %p87 = por %p85, %p86
      %p88 = scmp.ne.s32.totalorder %s76, %s77
      %p89 = scmp.eq.s32.totalorder %s20, 3
      %p90 = por %p88, %p89
      %p92 = scmp.ne.s32.totalorder %s77, %s91
      %p93 = scmp.eq.s32.totalorder %s20, 0
      %p94 = por %p92, %p93
      %s96 = sadd.s32 %s95, 1
      %p99 = scmp.eq.s32.totalorder %s14, 3
      %p100 = scmp.ne.s32.totalorder %s95, %s97
      %p101 = scmp.eq.s32.totalorder %s14, 0
      %p102 = por %p100, %p101
      %p103 = scmp.ne.s32.totalorder %s95, %s97
      %p104 = scmp.eq.s32.totalorder %s19, 3
      %p105 = por %p103, %p104
      %p106 = scmp.ne.s32.totalorder %s97, %s98
      %p107 = scmp.eq.s32.totalorder %s19, 0
      %p108 = por %p106, %p107
      %p109 = scmp.ne.s32.totalorder %s97, %s98
      %p110 = scmp.eq.s32.totalorder %s20, 3
      %p111 = por %p109, %p110
      %p113 = scmp.ne.s32.totalorder %s98, %s112
      %p114 = scmp.eq.s32.totalorder %s20, 0
      %p115 = por %p113, %p114
      %s116 = ssub.s32 %s14, %s21
      %p117 = scmp.eq.s32.totalorder %s116, 0
      %s119 = sadd.s32 %s118, 1
      %s120 = scalar_select %p117, %s118, %s119
      %p123 = pneg %p117
      %p124 = scmp.eq.s32.totalorder %s14, 3
      %p125 = por %p123, %p124
      %p126 = scmp.ne.s32.totalorder %s118, %s121
      %p127 = scmp.eq.s32.totalorder %s14, 0
      %p128 = por %p126, %p127
      %p129 = scmp.ne.s32.totalorder %s118, %s121
      %p130 = scmp.eq.s32.totalorder %s19, 3
      %p131 = por %p129, %p130
      %p132 = scmp.ne.s32.totalorder %s121, %s122
      %p133 = scmp.eq.s32.totalorder %s19, 0
      %p134 = por %p132, %p133
      %p135 = scmp.ne.s32.totalorder %s121, %s122
      %p136 = scmp.eq.s32.totalorder %s20, 3
      %p137 = por %p135, %p136
      %p139 = scmp.ne.s32.totalorder %s122, %s138
      %p140 = scmp.eq.s32.totalorder %s20, 0
      %p141 = por %p139, %p140
      %p142 = scmp.le.s32.totalorder 1, %s14
      %p143 = scmp.lt.s32.totalorder %s14, 5
      %p144 = pnand %p142, %p143
      %p145 = pneg %p144
      // Predicated region
      $region9: #{gnn_forward.1} parent=5 // pred_check
        _
      $region10: #{gnn_forward.1} parent=5 // pred_check_branch
        %147 = sbr.rel (%p144) target = $region12
      $region11: #{gnn_forward.1} parent=5 // pred_region
        %s148 = ssub.s32 %s14, 1
        // Predicated region
        $region13: #{gnn_forward.1} parent=11 // pred_check
          %p149 = pneg %p87
        $region14: #{gnn_forward.1} parent=11 // pred_check_branch
          %151 = sbr.rel (%p149) target = $region16
        $region15: #{gnn_forward.1} parent=11 // pred_region
          %153 = vsyncadd [#allocation3], 0
          %s154 = sshll.u32 %s2, 4
          %s155 = int_to_ptr.hbm [resolvable:$true] %s154
          %s156 = sshll.u32 [#allocation2], 4
          %s157 = int_to_ptr.vmem [resolvable:$true] %s156
          %162 = dma.hbm_to_vmem [thread:$0]  %s155, 15360, %s157, [#allocation3], 64, 64, 4
        $region16: #{gnn_forward.1} parent=11 // pred_fallthru
          _
        // Predicated region
        $region17: #{gnn_forward.1} parent=11 // pred_check
          %p163 = pneg %p108
        $region18: #{gnn_forward.1} parent=11 // pred_check_branch
          %165 = sbr.rel (%p163) target = $region20
        $region19: #{gnn_forward.1} parent=11 // pred_region
          _
        $region20: #{gnn_forward.1} parent=11 // pred_fallthru
          _
      $region12: #{gnn_forward.1} parent=5 // pred_fallthru
        _
      %p166 = scmp.lt.s32.totalorder %s14, 4
      // Predicated region
      $region21: #{gnn_forward.1} parent=5 // pred_check
        %p167 = pneg %p166
      $region22: #{gnn_forward.1} parent=5 // pred_check_branch
        %169 = sbr.rel (%p167) target = $region24
      $region23: #{gnn_forward.1} parent=5 // pred_region
        // Predicated region
        $region25: #{gnn_forward.1} parent=23 // pred_check
          %p170 = pneg %p34
        $region26: #{gnn_forward.1} parent=23 // pred_check_branch
          %172 = sbr.rel (%p170) target = $region28
        $region27: #{gnn_forward.1} parent=23 // pred_region
          %p173 = scmp.lt.s32.totalorder %s14, 3
          %s174 = scalar_select %p173, %s14, 3
          %s175 = smul.addr %s174, 2
          %s176 = smul.addr %s175, 8
          %s177 = scalar_lea.vmem %s0, %s176
        $region28: #{gnn_forward.1} parent=23 // pred_fallthru
          _
        // Predicated region
        $region29: #{gnn_forward.1} parent=23 // pred_check
          %p178 = pneg %p60
        $region30: #{gnn_forward.1} parent=23 // pred_check_branch
          %180 = sbr.rel (%p178) target = $region32
        $region31: #{gnn_forward.1} parent=23 // pred_region
          %p181 = scmp.lt.s32.totalorder %s14, 3
          %s182 = scalar_select %p181, %s14, 3
          %s183 = smul.addr %s182, 5
          %s184 = smul.addr %s183, 4
          %s185 = scalar_lea.vmem %s1, %s184
        $region32: #{gnn_forward.1} parent=23 // pred_fallthru
          _
      $region24: #{gnn_forward.1} parent=5 // pred_fallthru
        _
      %p186 = scmp.le.s32.totalorder 1, %s14
      %p187 = scmp.lt.s32.totalorder %s14, 5
      %p188 = pnand %p186, %p187
      %p189 = pneg %p188
      // Predicated region
      $region33: #{gnn_forward.1} parent=5 // pred_check
        _
      $region34: #{gnn_forward.1} parent=5 // pred_check_branch
        %191 = sbr.rel (%p188) target = $region36
      $region35: #{gnn_forward.1} parent=5 // pred_region
        %s192 = ssub.s32 %s14, 1
        // Predicated region
        $region37: #{gnn_forward.1} parent=35 // pred_check
          %p193 = pneg %p87
        $region38: #{gnn_forward.1} parent=35 // pred_check_branch
          %195 = sbr.rel (%p193) target = $region40
        $region39: #{gnn_forward.1} parent=35 // pred_region
          %197 = dma.done [#allocation3], 15360
        $region40: #{gnn_forward.1} parent=35 // pred_fallthru
          _
        %p198 = scmp.lt.s32.totalorder %s19, 3
        %s199 = scalar_select %p198, %s19, 3
        %s200 = smul.addr %s199, 2
        %s201 = smul.addr %s200, 8
        %s202 = scalar_lea.vmem %s0, %s201
        %p203 = pneg %p40
        %p204 = pneg %p37
        %p205 = scmp.lt.s32.totalorder %s19, 3
        %s206 = scalar_select %p205, %s19, 3
        %s207 = smul.addr %s206, 5
        %s208 = smul.addr %s207, 4
        %s209 = scalar_lea.vmem %s1, %s208
        %p210 = pneg %p66
        %p211 = pneg %p63
        %p212 = pneg %p87
        %p213 = pneg %p84
        %p214 = pneg %p108
        %p215 = pneg %p105
        %p216 = pneg %p134
        %p217 = pneg %p131
        %s218 = sand.u32 %s121, 1
        %s219 = scalar_lea.sflag [#allocation4], %s218
        %s220 = sand.u32 %s121, 1
        %s221 = smul.addr %s220, 2
        %s222 = scalar_lea.vmem [#allocation5], %s221
        %p223 = scmp.lt.s32.totalorder %s19, 3
        %s224 = scalar_select %p223, %s19, 3
        %s225 = smul.addr %s224, 2
        %s226 = smul.addr %s225, 8
        %s227 = scalar_lea.vmem %s0, %s226
        %p228 = scmp.lt.s32.totalorder %s19, 3
        %s229 = scalar_select %p228, %s19, 3
        %s230 = smul.addr %s229, 5
        %s231 = smul.addr %s230, 4
        %s232 = scalar_lea.vmem %s1, %s231
        %v234 = vld [vmem:[%s227] sm:$0xff]
        %v235 = vld [vmem:[%s227 + $0x8] sm:$0xff]
        %v236 = vld [vmem:[%s232] sm:$0xf]
        %v237 = vld [vmem:[%s232 + $0x4] sm:$0xf]
        %v238 = vld [vmem:[%s232 + $0x8] sm:$0xf]
        %v239 = vld [vmem:[%s232 + $0xc] sm:$0xf]
        %v240 = vld [vmem:[%s232 + $0x10] sm:$0x1]
        %v241 = vpack.c.bf16 %v235, %v234
        %v242 = vld [vmem:[#allocation2] sm:$0xf]
        %v243 = vld [vmem:[#allocation2 + $0x4] sm:$0xf]
        %v244 = vld [vmem:[#allocation2 + $0x8] sm:$0xf]
        %v245 = vld [vmem:[#allocation2 + $0xc] sm:$0xf]
        %v246 = vld [vmem:[#allocation2 + $0x10] sm:$0xf]
        %v247 = vld [vmem:[#allocation2 + $0x14] sm:$0xf]
        %v248 = vld [vmem:[#allocation2 + $0x18] sm:$0xf]
        %v249 = vld [vmem:[#allocation2 + $0x1c] sm:$0xf]
        %v250 = vld [vmem:[#allocation2 + $0x20] sm:$0xf]
        %v251 = vld [vmem:[#allocation2 + $0x24] sm:$0xf]
        %v252 = vld [vmem:[#allocation2 + $0x28] sm:$0xf]
        %v253 = vld [vmem:[#allocation2 + $0x2c] sm:$0xf]
        %v254 = vld [vmem:[#allocation2 + $0x30] sm:$0xf]
        %v255 = vld [vmem:[#allocation2 + $0x34] sm:$0xf]
        %v256 = vld [vmem:[#allocation2 + $0x38] sm:$0xf]
        %v257 = vld [vmem:[#allocation2 + $0x3c] sm:$0xf]
        %v258 = vld [vmem:[%s3] sm:$0x1]
        %v260 = vperm.slane %v258, 0
        %v278 = vunpack.c.l.b16 %v242
        %v279 = vunpack.c.l.b16 %v243
        %v280 = vunpack.c.l.b16 %v244
        %v281 = vunpack.c.l.b16 %v245
        %v282 = vunpack.c.l.b16 %v246
        %v283 = vunpack.c.l.b16 %v247
        %v284 = vunpack.c.l.b16 %v248
        %v285 = vunpack.c.l.b16 %v249
        %v286 = vunpack.c.l.b16 %v250
        %v287 = vunpack.c.l.b16 %v251
        %v288 = vunpack.c.l.b16 %v252
        %v289 = vunpack.c.l.b16 %v253
        %v290 = vunpack.c.l.b16 %v254
        %v291 = vunpack.c.l.b16 %v255
        %v292 = vunpack.c.l.b16 %v256
        %v293 = vunpack.c.l.b16 %v257
        %v294 = vpack.c.b16 %v279, %v278
        %v295 = vpack.c.b16 %v281, %v280
        %v296 = vpack.c.b16 %v283, %v282
        %v297 = vpack.c.b16 %v285, %v284
        %v298 = vpack.c.b16 %v287, %v286
        %v299 = vpack.c.b16 %v289, %v288
        %v300 = vpack.c.b16 %v291, %v290
        %v301 = vpack.c.b16 %v293, %v292
        %310 = vmatpush.bf16.msra.mxu0 %v301
        %311 = vmatpush.bf16.msra.mxu0 %v300
        %312 = vmatpush.bf16.msra.mxu0 %v299
        %313 = vmatpush.bf16.msra.mxu0 %v298
        %314 = vmatpush.bf16.msra.mxu0 %v297
        %315 = vmatpush.bf16.msra.mxu0 %v296
        %316 = vmatpush.bf16.msra.mxu0 %v295
        %317 = vmatpush.bf16.msra.mxu0 %v294
        %318 = vmatmul.bf16.gmra.mxu0 %v241
        %v319 = vpop.f32.mrf.mxu0
        %v320 = vadd.f32 %v260, %v319
        %v321 = vpop.f32.mrf.mxu0
        %v322 = vadd.f32 %v260, %v321
        %323 = vdwg.mxu0
        %v326 = vunpack.c.l.b16 %v236
        %v327 = vunpack.c.l.b16 %v237
        %v328 = vpack.c.b16 %v327, %v326
        %vm329 = vcmask 130048
        %v331 = vsel %vm329, %v328, 0
        %333 = vmatpush.bf16.msra.mxu0 0
        %334 = vmatpush.bf16.msra.mxu0 0
        %335 = vmatpush.bf16.msra.mxu0 0
        %336 = vmatpush.bf16.msra.mxu0 0
        %337 = vmatpush.bf16.msra.mxu0 0
        %338 = vmatpush.bf16.msra.mxu0 0
        %339 = vmatpush.bf16.msra.mxu0 0
        %340 = vmatpush.bf16.msra.mxu0 %v241
        %341 = vmatmul.bf16.gmra.mxu0 %v331
        %v342 = vpop.f32.mrf.mxu0
        %v343 = vadd.f32 0.0, %v342
        %v344 = vpop.f32.mrf.mxu0
        %v345 = vadd.f32 0.0, %v344
        %346 = vdwg.mxu0
        %v347 = vadd.f32 %v234, %v343
        %v348 = vadd.f32 %v235, %v345
        %v349 = vpack.c.bf16 %v348, %v347
        %s350 = scalar_lea.vmem [#allocation2], 64
        %v351 = vld [vmem:[%s350] sm:$0xf]
        %v352 = vld [vmem:[%s350 + $0x4] sm:$0xf]
        %v353 = vld [vmem:[%s350 + $0x8] sm:$0xf]
        %v354 = vld [vmem:[%s350 + $0xc] sm:$0xf]
        %v355 = vld [vmem:[%s350 + $0x10] sm:$0xf]
        %v356 = vld [vmem:[%s350 + $0x14] sm:$0xf]
        %v357 = vld [vmem:[%s350 + $0x18] sm:$0xf]
        %v358 = vld [vmem:[%s350 + $0x1c] sm:$0xf]
        %v359 = vld [vmem:[%s350 + $0x20] sm:$0xf]
        %v360 = vld [vmem:[%s350 + $0x24] sm:$0xf]
        %v361 = vld [vmem:[%s350 + $0x28] sm:$0xf]
        %v362 = vld [vmem:[%s350 + $0x2c] sm:$0xf]
        %v363 = vld [vmem:[%s350 + $0x30] sm:$0xf]
        %v364 = vld [vmem:[%s350 + $0x34] sm:$0xf]
        %v365 = vld [vmem:[%s350 + $0x38] sm:$0xf]
        %v366 = vld [vmem:[%s350 + $0x3c] sm:$0xf]
        %s367 = scalar_lea.vmem %s3, 1
        %v368 = vld [vmem:[%s367] sm:$0x1]
        %v370 = vperm.slane %v368, 0
        %v388 = vunpack.c.l.b16 %v351
        %v389 = vunpack.c.l.b16 %v352
        %v390 = vunpack.c.l.b16 %v353
        %v391 = vunpack.c.l.b16 %v354
        %v392 = vunpack.c.l.b16 %v355
        %v393 = vunpack.c.l.b16 %v356
        %v394 = vunpack.c.l.b16 %v357
        %v395 = vunpack.c.l.b16 %v358
        %v396 = vunpack.c.l.b16 %v359
        %v397 = vunpack.c.l.b16 %v360
        %v398 = vunpack.c.l.b16 %v361
        %v399 = vunpack.c.l.b16 %v362
        %v400 = vunpack.c.l.b16 %v363
        %v401 = vunpack.c.l.b16 %v364
        %v402 = vunpack.c.l.b16 %v365
        %v403 = vunpack.c.l.b16 %v366
        %v404 = vpack.c.b16 %v389, %v388
        %v405 = vpack.c.b16 %v391, %v390
        %v406 = vpack.c.b16 %v393, %v392
        %v407 = vpack.c.b16 %v395, %v394
        %v408 = vpack.c.b16 %v397, %v396
        %v409 = vpack.c.b16 %v399, %v398
        %v410 = vpack.c.b16 %v401, %v400
        %v411 = vpack.c.b16 %v403, %v402
        %420 = vmatpush.bf16.msra.mxu0 %v411
        %421 = vmatpush.bf16.msra.mxu0 %v410
        %422 = vmatpush.bf16.msra.mxu0 %v409
        %423 = vmatpush.bf16.msra.mxu0 %v408
        %424 = vmatpush.bf16.msra.mxu0 %v407
        %425 = vmatpush.bf16.msra.mxu0 %v406
        %426 = vmatpush.bf16.msra.mxu0 %v405
        %427 = vmatpush.bf16.msra.mxu0 %v404
        %428 = vmatmul.bf16.gmra.mxu0 %v349
        %v429 = vpop.f32.mrf.mxu0
        %v430 = vadd.f32 %v370, %v429
        %v431 = vpop.f32.mrf.mxu0
        %v432 = vadd.f32 %v370, %v431
        %433 = vdwg.mxu0
        %v434 = vmax.f32 %v430, 0.0
        %v435 = vmax.f32 %v432, 0.0
        %v436 = vpack.c.bf16 %v435, %v434
        %s437 = scalar_lea.vmem [#allocation2], 128
        %v438 = vld [vmem:[%s437] sm:$0xf]
        %v439 = vld [vmem:[%s437 + $0x4] sm:$0xf]
        %v440 = vld [vmem:[%s437 + $0x8] sm:$0xf]
        %v441 = vld [vmem:[%s437 + $0xc] sm:$0xf]
        %v442 = vld [vmem:[%s437 + $0x10] sm:$0xf]
        %v443 = vld [vmem:[%s437 + $0x14] sm:$0xf]
        %v444 = vld [vmem:[%s437 + $0x18] sm:$0xf]
        %v445 = vld [vmem:[%s437 + $0x1c] sm:$0xf]
        %v446 = vld [vmem:[%s437 + $0x20] sm:$0xf]
        %v447 = vld [vmem:[%s437 + $0x24] sm:$0xf]
        %v448 = vld [vmem:[%s437 + $0x28] sm:$0xf]
        %v449 = vld [vmem:[%s437 + $0x2c] sm:$0xf]
        %v450 = vld [vmem:[%s437 + $0x30] sm:$0xf]
        %v451 = vld [vmem:[%s437 + $0x34] sm:$0xf]
        %v452 = vld [vmem:[%s437 + $0x38] sm:$0xf]
        %v453 = vld [vmem:[%s437 + $0x3c] sm:$0xf]
        %s454 = scalar_lea.vmem %s3, 2
        %v455 = vld [vmem:[%s454] sm:$0x1]
        %v457 = vperm.slane %v455, 0
        %v475 = vunpack.c.l.b16 %v438
        %v476 = vunpack.c.l.b16 %v439
        %v477 = vunpack.c.l.b16 %v440
        %v478 = vunpack.c.l.b16 %v441
        %v479 = vunpack.c.l.b16 %v442
        %v480 = vunpack.c.l.b16 %v443
        %v481 = vunpack.c.l.b16 %v444
        %v482 = vunpack.c.l.b16 %v445
        %v483 = vunpack.c.l.b16 %v446
        %v484 = vunpack.c.l.b16 %v447
        %v485 = vunpack.c.l.b16 %v448
        %v486 = vunpack.c.l.b16 %v449
        %v487 = vunpack.c.l.b16 %v450
        %v488 = vunpack.c.l.b16 %v451
        %v489 = vunpack.c.l.b16 %v452
        %v490 = vunpack.c.l.b16 %v453
        %v491 = vpack.c.b16 %v476, %v475
        %v492 = vpack.c.b16 %v478, %v477
        %v493 = vpack.c.b16 %v480, %v479
        %v494 = vpack.c.b16 %v482, %v481
        %v495 = vpack.c.b16 %v484, %v483
        %v496 = vpack.c.b16 %v486, %v485
        %v497 = vpack.c.b16 %v488, %v487
        %v498 = vpack.c.b16 %v490, %v489
        %507 = vmatpush.bf16.msra.mxu0 %v498
        %508 = vmatpush.bf16.msra.mxu0 %v497
        %509 = vmatpush.bf16.msra.mxu0 %v496
        %510 = vmatpush.bf16.msra.mxu0 %v495
        %511 = vmatpush.bf16.msra.mxu0 %v494
        %512 = vmatpush.bf16.msra.mxu0 %v493
        %513 = vmatpush.bf16.msra.mxu0 %v492
        %514 = vmatpush.bf16.msra.mxu0 %v491
        %515 = vmatmul.bf16.gmra.mxu0 %v436
        %v516 = vpop.f32.mrf.mxu0
        %v517 = vadd.f32 %v457, %v516
        %v518 = vpop.f32.mrf.mxu0
        %v519 = vadd.f32 %v457, %v518
        %520 = vdwg.mxu0
        %v521 = vadd.f32 %v320, %v517
        %v522 = vadd.f32 %v322, %v519
        %v525 = vunpack.c.l.b16 %v238
        %v526 = vunpack.c.l.b16 %v239
        %v527 = vpack.c.b16 %v526, %v525
        %v529 = vsel %vm329, %v527, 0
        %531 = vmatpush.bf16.msra.mxu0 0
        %532 = vmatpush.bf16.msra.mxu0 0
        %533 = vmatpush.bf16.msra.mxu0 0
        %534 = vmatpush.bf16.msra.mxu0 0
        %535 = vmatpush.bf16.msra.mxu0 0
        %536 = vmatpush.bf16.msra.mxu0 0
        %537 = vmatpush.bf16.msra.mxu0 0
        %538 = vmatpush.bf16.msra.mxu0 %v241
        %539 = vmatmul.bf16.gmra.mxu0 %v529
        %v540 = vpop.f32.mrf.mxu0
        %v541 = vadd.f32 0.0, %v540
        %v542 = vpop.f32.mrf.mxu0
        %v543 = vadd.f32 0.0, %v542
        %544 = vdwg.mxu0
        %v545 = vadd.f32 %v234, %v541
        %v546 = vadd.f32 %v235, %v543
        %v547 = vpack.c.bf16 %v546, %v545
        %s548 = scalar_lea.vmem [#allocation2], 192
        %v549 = vld [vmem:[%s548] sm:$0xf]
        %v550 = vld [vmem:[%s548 + $0x4] sm:$0xf]
        %v551 = vld [vmem:[%s548 + $0x8] sm:$0xf]
        %v552 = vld [vmem:[%s548 + $0xc] sm:$0xf]
        %v553 = vld [vmem:[%s548 + $0x10] sm:$0xf]
        %v554 = vld [vmem:[%s548 + $0x14] sm:$0xf]
        %v555 = vld [vmem:[%s548 + $0x18] sm:$0xf]
        %v556 = vld [vmem:[%s548 + $0x1c] sm:$0xf]
        %v557 = vld [vmem:[%s548 + $0x20] sm:$0xf]
        %v558 = vld [vmem:[%s548 + $0x24] sm:$0xf]
        %v559 = vld [vmem:[%s548 + $0x28] sm:$0xf]
        %v560 = vld [vmem:[%s548 + $0x2c] sm:$0xf]
        %v561 = vld [vmem:[%s548 + $0x30] sm:$0xf]
        %v562 = vld [vmem:[%s548 + $0x34] sm:$0xf]
        %v563 = vld [vmem:[%s548 + $0x38] sm:$0xf]
        %v564 = vld [vmem:[%s548 + $0x3c] sm:$0xf]
        %s565 = scalar_lea.vmem %s3, 3
        %v566 = vld [vmem:[%s565] sm:$0x1]
        %v568 = vperm.slane %v566, 0
        %v586 = vunpack.c.l.b16 %v549
        %v587 = vunpack.c.l.b16 %v550
        %v588 = vunpack.c.l.b16 %v551
        %v589 = vunpack.c.l.b16 %v552
        %v590 = vunpack.c.l.b16 %v553
        %v591 = vunpack.c.l.b16 %v554
        %v592 = vunpack.c.l.b16 %v555
        %v593 = vunpack.c.l.b16 %v556
        %v594 = vunpack.c.l.b16 %v557
        %v595 = vunpack.c.l.b16 %v558
        %v596 = vunpack.c.l.b16 %v559
        %v597 = vunpack.c.l.b16 %v560
        %v598 = vunpack.c.l.b16 %v561
        %v599 = vunpack.c.l.b16 %v562
        %v600 = vunpack.c.l.b16 %v563
        %v601 = vunpack.c.l.b16 %v564
        %v602 = vpack.c.b16 %v587, %v586
        %v603 = vpack.c.b16 %v589, %v588
        %v604 = vpack.c.b16 %v591, %v590
        %v605 = vpack.c.b16 %v593, %v592
        %v606 = vpack.c.b16 %v595, %v594
        %v607 = vpack.c.b16 %v597, %v596
        %v608 = vpack.c.b16 %v599, %v598
        %v609 = vpack.c.b16 %v601, %v600
        %618 = vmatpush.bf16.msra.mxu0 %v609
        %619 = vmatpush.bf16.msra.mxu0 %v608
        %620 = vmatpush.bf16.msra.mxu0 %v607
        %621 = vmatpush.bf16.msra.mxu0 %v606
        %622 = vmatpush.bf16.msra.mxu0 %v605
        %623 = vmatpush.bf16.msra.mxu0 %v604
        %624 = vmatpush.bf16.msra.mxu0 %v603
        %625 = vmatpush.bf16.msra.mxu0 %v602
        %626 = vmatmul.bf16.gmra.mxu0 %v547
        %v627 = vpop.f32.mrf.mxu0
        %v628 = vadd.f32 %v568, %v627
        %v629 = vpop.f32.mrf.mxu0
        %v630 = vadd.f32 %v568, %v629
        %631 = vdwg.mxu0
        %v632 = vmax.f32 %v628, 0.0
        %v633 = vmax.f32 %v630, 0.0
        %v634 = vpack.c.bf16 %v633, %v632
        %s635 = scalar_lea.vmem [#allocation2], 256
        %v636 = vld [vmem:[%s635] sm:$0xf]
        %v637 = vld [vmem:[%s635 + $0x4] sm:$0xf]
        %v638 = vld [vmem:[%s635 + $0x8] sm:$0xf]
        %v639 = vld [vmem:[%s635 + $0xc] sm:$0xf]
        %v640 = vld [vmem:[%s635 + $0x10] sm:$0xf]
        %v641 = vld [vmem:[%s635 + $0x14] sm:$0xf]
        %v642 = vld [vmem:[%s635 + $0x18] sm:$0xf]
        %v643 = vld [vmem:[%s635 + $0x1c] sm:$0xf]
        %v644 = vld [vmem:[%s635 + $0x20] sm:$0xf]
        %v645 = vld [vmem:[%s635 + $0x24] sm:$0xf]
        %v646 = vld [vmem:[%s635 + $0x28] sm:$0xf]
        %v647 = vld [vmem:[%s635 + $0x2c] sm:$0xf]
        %v648 = vld [vmem:[%s635 + $0x30] sm:$0xf]
        %v649 = vld [vmem:[%s635 + $0x34] sm:$0xf]
        %v650 = vld [vmem:[%s635 + $0x38] sm:$0xf]
        %v651 = vld [vmem:[%s635 + $0x3c] sm:$0xf]
        %s652 = scalar_lea.vmem %s3, 4
        %v653 = vld [vmem:[%s652] sm:$0x1]
        %v655 = vperm.slane %v653, 0
        %v673 = vunpack.c.l.b16 %v636
        %v674 = vunpack.c.l.b16 %v637
        %v675 = vunpack.c.l.b16 %v638
        %v676 = vunpack.c.l.b16 %v639
        %v677 = vunpack.c.l.b16 %v640
        %v678 = vunpack.c.l.b16 %v641
        %v679 = vunpack.c.l.b16 %v642
        %v680 = vunpack.c.l.b16 %v643
        %v681 = vunpack.c.l.b16 %v644
        %v682 = vunpack.c.l.b16 %v645
        %v683 = vunpack.c.l.b16 %v646
        %v684 = vunpack.c.l.b16 %v647
        %v685 = vunpack.c.l.b16 %v648
        %v686 = vunpack.c.l.b16 %v649
        %v687 = vunpack.c.l.b16 %v650
        %v688 = vunpack.c.l.b16 %v651
        %v689 = vpack.c.b16 %v674, %v673
        %v690 = vpack.c.b16 %v676, %v675
        %v691 = vpack.c.b16 %v678, %v677
        %v692 = vpack.c.b16 %v680, %v679
        %v693 = vpack.c.b16 %v682, %v681
        %v694 = vpack.c.b16 %v684, %v683
        %v695 = vpack.c.b16 %v686, %v685
        %v696 = vpack.c.b16 %v688, %v687
        %705 = vmatpush.bf16.msra.mxu0 %v696
        %706 = vmatpush.bf16.msra.mxu0 %v695
        %707 = vmatpush.bf16.msra.mxu0 %v694
        %708 = vmatpush.bf16.msra.mxu0 %v693
        %709 = vmatpush.bf16.msra.mxu0 %v692
        %710 = vmatpush.bf16.msra.mxu0 %v691
        %711 = vmatpush.bf16.msra.mxu0 %v690
        %712 = vmatpush.bf16.msra.mxu0 %v689
        %713 = vmatmul.bf16.gmra.mxu0 %v634
        %v714 = vpop.f32.mrf.mxu0
        %v715 = vadd.f32 %v655, %v714
        %v716 = vpop.f32.mrf.mxu0
        %v717 = vadd.f32 %v655, %v716
        %718 = vdwg.mxu0
        %v719 = vadd.f32 %v521, %v715
        %v720 = vadd.f32 %v522, %v717
        %v721 = vmax.f32 %v719, 0.0
        %v722 = vmax.f32 %v720, 0.0
        %v723 = vpack.c.bf16 %v722, %v721
        %s724 = scalar_lea.vmem [#allocation2], 320
        %v725 = vld [vmem:[%s724] sm:$0xf]
        %v726 = vld [vmem:[%s724 + $0x4] sm:$0xf]
        %v727 = vld [vmem:[%s724 + $0x8] sm:$0xf]
        %v728 = vld [vmem:[%s724 + $0xc] sm:$0xf]
        %v729 = vld [vmem:[%s724 + $0x10] sm:$0xf]
        %v730 = vld [vmem:[%s724 + $0x14] sm:$0xf]
        %v731 = vld [vmem:[%s724 + $0x18] sm:$0xf]
        %v732 = vld [vmem:[%s724 + $0x1c] sm:$0xf]
        %v733 = vld [vmem:[%s724 + $0x20] sm:$0xf]
        %v734 = vld [vmem:[%s724 + $0x24] sm:$0xf]
        %v735 = vld [vmem:[%s724 + $0x28] sm:$0xf]
        %v736 = vld [vmem:[%s724 + $0x2c] sm:$0xf]
        %v737 = vld [vmem:[%s724 + $0x30] sm:$0xf]
        %v738 = vld [vmem:[%s724 + $0x34] sm:$0xf]
        %v739 = vld [vmem:[%s724 + $0x38] sm:$0xf]
        %v740 = vld [vmem:[%s724 + $0x3c] sm:$0xf]
        %s741 = scalar_lea.vmem %s3, 5
        %v742 = vld [vmem:[%s741] sm:$0x1]
        %v744 = vperm.slane %v742, 0
        %v762 = vunpack.c.l.b16 %v725
        %v763 = vunpack.c.l.b16 %v726
        %v764 = vunpack.c.l.b16 %v727
        %v765 = vunpack.c.l.b16 %v728
        %v766 = vunpack.c.l.b16 %v729
        %v767 = vunpack.c.l.b16 %v730
        %v768 = vunpack.c.l.b16 %v731
        %v769 = vunpack.c.l.b16 %v732
        %v770 = vunpack.c.l.b16 %v733
        %v771 = vunpack.c.l.b16 %v734
        %v772 = vunpack.c.l.b16 %v735
        %v773 = vunpack.c.l.b16 %v736
        %v774 = vunpack.c.l.b16 %v737
        %v775 = vunpack.c.l.b16 %v738
        %v776 = vunpack.c.l.b16 %v739
        %v777 = vunpack.c.l.b16 %v740
        %v778 = vpack.c.b16 %v763, %v762
        %v779 = vpack.c.b16 %v765, %v764
        %v780 = vpack.c.b16 %v767, %v766
        %v781 = vpack.c.b16 %v769, %v768
        %v782 = vpack.c.b16 %v771, %v770
        %v783 = vpack.c.b16 %v773, %v772
        %v784 = vpack.c.b16 %v775, %v774
        %v785 = vpack.c.b16 %v777, %v776
        %794 = vmatpush.bf16.msra.mxu0 %v785
        %795 = vmatpush.bf16.msra.mxu0 %v784
        %796 = vmatpush.bf16.msra.mxu0 %v783
        %797 = vmatpush.bf16.msra.mxu0 %v782
        %798 = vmatpush.bf16.msra.mxu0 %v781
        %799 = vmatpush.bf16.msra.mxu0 %v780
        %800 = vmatpush.bf16.msra.mxu0 %v779
        %801 = vmatpush.bf16.msra.mxu0 %v778
        %802 = vmatmul.bf16.gmra.mxu0 %v723
        %v803 = vpop.f32.mrf.mxu0
        %v804 = vadd.f32 %v744, %v803
        %v805 = vpop.f32.mrf.mxu0
        %v806 = vadd.f32 %v744, %v805
        %807 = vdwg.mxu0
        %808 = vmatpush.bf16.msra.mxu0 0
        %809 = vmatpush.bf16.msra.mxu0 0
        %810 = vmatpush.bf16.msra.mxu0 0
        %811 = vmatpush.bf16.msra.mxu0 0
        %812 = vmatpush.bf16.msra.mxu0 0
        %813 = vmatpush.bf16.msra.mxu0 0
        %814 = vmatpush.bf16.msra.mxu0 0
        %815 = vmatpush.bf16.msra.mxu0 %v723
        %816 = vmatmul.bf16.gmra.mxu0 %v331
        %v817 = vpop.f32.mrf.mxu0
        %v818 = vadd.f32 0.0, %v817
        %v819 = vpop.f32.mrf.mxu0
        %v820 = vadd.f32 0.0, %v819
        %821 = vdwg.mxu0
        %v822 = vadd.f32 %v721, %v818
        %v823 = vadd.f32 %v722, %v820
        %v824 = vpack.c.bf16 %v823, %v822
        %s825 = scalar_lea.vmem [#allocation2], 384
        %v826 = vld [vmem:[%s825] sm:$0xf]
        %v827 = vld [vmem:[%s825 + $0x4] sm:$0xf]
        %v828 = vld [vmem:[%s825 + $0x8] sm:$0xf]
        %v829 = vld [vmem:[%s825 + $0xc] sm:$0xf]
        %v830 = vld [vmem:[%s825 + $0x10] sm:$0xf]
        %v831 = vld [vmem:[%s825 + $0x14] sm:$0xf]
        %v832 = vld [vmem:[%s825 + $0x18] sm:$0xf]
        %v833 = vld [vmem:[%s825 + $0x1c] sm:$0xf]
        %v834 = vld [vmem:[%s825 + $0x20] sm:$0xf]
        %v835 = vld [vmem:[%s825 + $0x24] sm:$0xf]
        %v836 = vld [vmem:[%s825 + $0x28] sm:$0xf]
        %v837 = vld [vmem:[%s825 + $0x2c] sm:$0xf]
        %v838 = vld [vmem:[%s825 + $0x30] sm:$0xf]
        %v839 = vld [vmem:[%s825 + $0x34] sm:$0xf]
        %v840 = vld [vmem:[%s825 + $0x38] sm:$0xf]
        %v841 = vld [vmem:[%s825 + $0x3c] sm:$0xf]
        %s842 = scalar_lea.vmem %s3, 6
        %v843 = vld [vmem:[%s842] sm:$0x1]
        %v845 = vperm.slane %v843, 0
        %v863 = vunpack.c.l.b16 %v826
        %v864 = vunpack.c.l.b16 %v827
        %v865 = vunpack.c.l.b16 %v828
        %v866 = vunpack.c.l.b16 %v829
        %v867 = vunpack.c.l.b16 %v830
        %v868 = vunpack.c.l.b16 %v831
        %v869 = vunpack.c.l.b16 %v832
        %v870 = vunpack.c.l.b16 %v833
        %v871 = vunpack.c.l.b16 %v834
        %v872 = vunpack.c.l.b16 %v835
        %v873 = vunpack.c.l.b16 %v836
        %v874 = vunpack.c.l.b16 %v837
        %v875 = vunpack.c.l.b16 %v838
        %v876 = vunpack.c.l.b16 %v839
        %v877 = vunpack.c.l.b16 %v840
        %v878 = vunpack.c.l.b16 %v841
        %v879 = vpack.c.b16 %v864, %v863
        %v880 = vpack.c.b16 %v866, %v865
        %v881 = vpack.c.b16 %v868, %v867
        %v882 = vpack.c.b16 %v870, %v869
        %v883 = vpack.c.b16 %v872, %v871
        %v884 = vpack.c.b16 %v874, %v873
        %v885 = vpack.c.b16 %v876, %v875
        %v886 = vpack.c.b16 %v878, %v877
        %895 = vmatpush.bf16.msra.mxu0 %v886
        %896 = vmatpush.bf16.msra.mxu0 %v885
        %897 = vmatpush.bf16.msra.mxu0 %v884
        %898 = vmatpush.bf16.msra.mxu0 %v883
        %899 = vmatpush.bf16.msra.mxu0 %v882
        %900 = vmatpush.bf16.msra.mxu0 %v881
        %901 = vmatpush.bf16.msra.mxu0 %v880
        %902 = vmatpush.bf16.msra.mxu0 %v879
        %903 = vmatmul.bf16.gmra.mxu0 %v824
        %v904 = vpop.f32.mrf.mxu0
        %v905 = vadd.f32 %v845, %v904
        %v906 = vpop.f32.mrf.mxu0
        %v907 = vadd.f32 %v845, %v906
        %908 = vdwg.mxu0
        %v909 = vmax.f32 %v905, 0.0
        %v910 = vmax.f32 %v907, 0.0
        %v911 = vpack.c.bf16 %v910, %v909
        %s912 = scalar_lea.vmem [#allocation2], 448
        %v913 = vld [vmem:[%s912] sm:$0xf]
        %v914 = vld [vmem:[%s912 + $0x4] sm:$0xf]
        %v915 = vld [vmem:[%s912 + $0x8] sm:$0xf]
        %v916 = vld [vmem:[%s912 + $0xc] sm:$0xf]
        %v917 = vld [vmem:[%s912 + $0x10] sm:$0xf]
        %v918 = vld [vmem:[%s912 + $0x14] sm:$0xf]
        %v919 = vld [vmem:[%s912 + $0x18] sm:$0xf]
        %v920 = vld [vmem:[%s912 + $0x1c] sm:$0xf]
        %v921 = vld [vmem:[%s912 + $0x20] sm:$0xf]
        %v922 = vld [vmem:[%s912 + $0x24] sm:$0xf]
        %v923 = vld [vmem:[%s912 + $0x28] sm:$0xf]
        %v924 = vld [vmem:[%s912 + $0x2c] sm:$0xf]
        %v925 = vld [vmem:[%s912 + $0x30] sm:$0xf]
        %v926 = vld [vmem:[%s912 + $0x34] sm:$0xf]
        %v927 = vld [vmem:[%s912 + $0x38] sm:$0xf]
        %v928 = vld [vmem:[%s912 + $0x3c] sm:$0xf]
        %s929 = scalar_lea.vmem %s3, 7
        %v930 = vld [vmem:[%s929] sm:$0x1]
        %v932 = vperm.slane %v930, 0
        %v950 = vunpack.c.l.b16 %v913
        %v951 = vunpack.c.l.b16 %v914
        %v952 = vunpack.c.l.b16 %v915
        %v953 = vunpack.c.l.b16 %v916
        %v954 = vunpack.c.l.b16 %v917
        %v955 = vunpack.c.l.b16 %v918
        %v956 = vunpack.c.l.b16 %v919
        %v957 = vunpack.c.l.b16 %v920
        %v958 = vunpack.c.l.b16 %v921
        %v959 = vunpack.c.l.b16 %v922
        %v960 = vunpack.c.l.b16 %v923
        %v961 = vunpack.c.l.b16 %v924
        %v962 = vunpack.c.l.b16 %v925
        %v963 = vunpack.c.l.b16 %v926
        %v964 = vunpack.c.l.b16 %v927
        %v965 = vunpack.c.l.b16 %v928
        %v966 = vpack.c.b16 %v951, %v950
        %v967 = vpack.c.b16 %v953, %v952
        %v968 = vpack.c.b16 %v955, %v954
        %v969 = vpack.c.b16 %v957, %v956
        %v970 = vpack.c.b16 %v959, %v958
        %v971 = vpack.c.b16 %v961, %v960
        %v972 = vpack.c.b16 %v963, %v962
        %v973 = vpack.c.b16 %v965, %v964
        %982 = vmatpush.bf16.msra.mxu0 %v973
        %983 = vmatpush.bf16.msra.mxu0 %v972
        %984 = vmatpush.bf16.msra.mxu0 %v971
        %985 = vmatpush.bf16.msra.mxu0 %v970
        %986 = vmatpush.bf16.msra.mxu0 %v969
        %987 = vmatpush.bf16.msra.mxu0 %v968
        %988 = vmatpush.bf16.msra.mxu0 %v967
        %989 = vmatpush.bf16.msra.mxu0 %v966
        %990 = vmatmul.bf16.gmra.mxu0 %v911
        %v991 = vpop.f32.mrf.mxu0
        %v992 = vadd.f32 %v932, %v991
        %v993 = vpop.f32.mrf.mxu0
        %v994 = vadd.f32 %v932, %v993
        %995 = vdwg.mxu0
        %v996 = vadd.f32 %v804, %v992
        %v997 = vadd.f32 %v806, %v994
        %998 = vmatpush.bf16.msra.mxu0 0
        %999 = vmatpush.bf16.msra.mxu0 0
        %1000 = vmatpush.bf16.msra.mxu0 0
        %1001 = vmatpush.bf16.msra.mxu0 0
        %1002 = vmatpush.bf16.msra.mxu0 0
        %1003 = vmatpush.bf16.msra.mxu0 0
        %1004 = vmatpush.bf16.msra.mxu0 0
        %1005 = vmatpush.bf16.msra.mxu0 %v723
        %1006 = vmatmul.bf16.gmra.mxu0 %v529
        %v1007 = vpop.f32.mrf.mxu0
        %v1008 = vadd.f32 0.0, %v1007
        %v1009 = vpop.f32.mrf.mxu0
        %v1010 = vadd.f32 0.0, %v1009
        %1011 = vdwg.mxu0
        %v1012 = vadd.f32 %v721, %v1008
        %v1013 = vadd.f32 %v722, %v1010
        %v1014 = vpack.c.bf16 %v1013, %v1012
        %s1015 = scalar_lea.vmem [#allocation2], 512
        %v1016 = vld [vmem:[%s1015] sm:$0xf]
        %v1017 = vld [vmem:[%s1015 + $0x4] sm:$0xf]
        %v1018 = vld [vmem:[%s1015 + $0x8] sm:$0xf]
        %v1019 = vld [vmem:[%s1015 + $0xc] sm:$0xf]
        %v1020 = vld [vmem:[%s1015 + $0x10] sm:$0xf]
        %v1021 = vld [vmem:[%s1015 + $0x14] sm:$0xf]
        %v1022 = vld [vmem:[%s1015 + $0x18] sm:$0xf]
        %v1023 = vld [vmem:[%s1015 + $0x1c] sm:$0xf]
        %v1024 = vld [vmem:[%s1015 + $0x20] sm:$0xf]
        %v1025 = vld [vmem:[%s1015 + $0x24] sm:$0xf]
        %v1026 = vld [vmem:[%s1015 + $0x28] sm:$0xf]
        %v1027 = vld [vmem:[%s1015 + $0x2c] sm:$0xf]
        %v1028 = vld [vmem:[%s1015 + $0x30] sm:$0xf]
        %v1029 = vld [vmem:[%s1015 + $0x34] sm:$0xf]
        %v1030 = vld [vmem:[%s1015 + $0x38] sm:$0xf]
        %v1031 = vld [vmem:[%s1015 + $0x3c] sm:$0xf]
        %s1032 = scalar_lea.vmem %s3, 8
        %v1033 = vld [vmem:[%s1032] sm:$0x1]
        %v1035 = vperm.slane %v1033, 0
        %v1053 = vunpack.c.l.b16 %v1016
        %v1054 = vunpack.c.l.b16 %v1017
        %v1055 = vunpack.c.l.b16 %v1018
        %v1056 = vunpack.c.l.b16 %v1019
        %v1057 = vunpack.c.l.b16 %v1020
        %v1058 = vunpack.c.l.b16 %v1021
        %v1059 = vunpack.c.l.b16 %v1022
        %v1060 = vunpack.c.l.b16 %v1023
        %v1061 = vunpack.c.l.b16 %v1024
        %v1062 = vunpack.c.l.b16 %v1025
        %v1063 = vunpack.c.l.b16 %v1026
        %v1064 = vunpack.c.l.b16 %v1027
        %v1065 = vunpack.c.l.b16 %v1028
        %v1066 = vunpack.c.l.b16 %v1029
        %v1067 = vunpack.c.l.b16 %v1030
        %v1068 = vunpack.c.l.b16 %v1031
        %v1069 = vpack.c.b16 %v1054, %v1053
        %v1070 = vpack.c.b16 %v1056, %v1055
        %v1071 = vpack.c.b16 %v1058, %v1057
        %v1072 = vpack.c.b16 %v1060, %v1059
        %v1073 = vpack.c.b16 %v1062, %v1061
        %v1074 = vpack.c.b16 %v1064, %v1063
        %v1075 = vpack.c.b16 %v1066, %v1065
        %v1076 = vpack.c.b16 %v1068, %v1067
        %1085 = vmatpush.bf16.msra.mxu0 %v1076
        %1086 = vmatpush.bf16.msra.mxu0 %v1075
        %1087 = vmatpush.bf16.msra.mxu0 %v1074
        %1088 = vmatpush.bf16.msra.mxu0 %v1073
        %1089 = vmatpush.bf16.msra.mxu0 %v1072
        %1090 = vmatpush.bf16.msra.mxu0 %v1071
        %1091 = vmatpush.bf16.msra.mxu0 %v1070
        %1092 = vmatpush.bf16.msra.mxu0 %v1069
        %1093 = vmatmul.bf16.gmra.mxu0 %v1014
        %v1094 = vpop.f32.mrf.mxu0
        %v1095 = vadd.f32 %v1035, %v1094
        %v1096 = vpop.f32.mrf.mxu0
        %v1097 = vadd.f32 %v1035, %v1096
        %1098 = vdwg.mxu0
        %v1099 = vmax.f32 %v1095, 0.0
        %v1100 = vmax.f32 %v1097, 0.0
        %v1101 = vpack.c.bf16 %v1100, %v1099
        %s1102 = scalar_lea.vmem [#allocation2], 576
        %v1103 = vld [vmem:[%s1102] sm:$0xf]
        %v1104 = vld [vmem:[%s1102 + $0x4] sm:$0xf]
        %v1105 = vld [vmem:[%s1102 + $0x8] sm:$0xf]
        %v1106 = vld [vmem:[%s1102 + $0xc] sm:$0xf]
        %v1107 = vld [vmem:[%s1102 + $0x10] sm:$0xf]
        %v1108 = vld [vmem:[%s1102 + $0x14] sm:$0xf]
        %v1109 = vld [vmem:[%s1102 + $0x18] sm:$0xf]
        %v1110 = vld [vmem:[%s1102 + $0x1c] sm:$0xf]
        %v1111 = vld [vmem:[%s1102 + $0x20] sm:$0xf]
        %v1112 = vld [vmem:[%s1102 + $0x24] sm:$0xf]
        %v1113 = vld [vmem:[%s1102 + $0x28] sm:$0xf]
        %v1114 = vld [vmem:[%s1102 + $0x2c] sm:$0xf]
        %v1115 = vld [vmem:[%s1102 + $0x30] sm:$0xf]
        %v1116 = vld [vmem:[%s1102 + $0x34] sm:$0xf]
        %v1117 = vld [vmem:[%s1102 + $0x38] sm:$0xf]
        %v1118 = vld [vmem:[%s1102 + $0x3c] sm:$0xf]
        %s1119 = scalar_lea.vmem %s3, 9
        %v1120 = vld [vmem:[%s1119] sm:$0x1]
        %v1122 = vperm.slane %v1120, 0
        %v1140 = vunpack.c.l.b16 %v1103
        %v1141 = vunpack.c.l.b16 %v1104
        %v1142 = vunpack.c.l.b16 %v1105
        %v1143 = vunpack.c.l.b16 %v1106
        %v1144 = vunpack.c.l.b16 %v1107
        %v1145 = vunpack.c.l.b16 %v1108
        %v1146 = vunpack.c.l.b16 %v1109
        %v1147 = vunpack.c.l.b16 %v1110
        %v1148 = vunpack.c.l.b16 %v1111
        %v1149 = vunpack.c.l.b16 %v1112
        %v1150 = vunpack.c.l.b16 %v1113
        %v1151 = vunpack.c.l.b16 %v1114
        %v1152 = vunpack.c.l.b16 %v1115
        %v1153 = vunpack.c.l.b16 %v1116
        %v1154 = vunpack.c.l.b16 %v1117
        %v1155 = vunpack.c.l.b16 %v1118
        %v1156 = vpack.c.b16 %v1141, %v1140
        %v1157 = vpack.c.b16 %v1143, %v1142
        %v1158 = vpack.c.b16 %v1145, %v1144
        %v1159 = vpack.c.b16 %v1147, %v1146
        %v1160 = vpack.c.b16 %v1149, %v1148
        %v1161 = vpack.c.b16 %v1151, %v1150
        %v1162 = vpack.c.b16 %v1153, %v1152
        %v1163 = vpack.c.b16 %v1155, %v1154
        %1172 = vmatpush.bf16.msra.mxu0 %v1163
        %1173 = vmatpush.bf16.msra.mxu0 %v1162
        %1174 = vmatpush.bf16.msra.mxu0 %v1161
        %1175 = vmatpush.bf16.msra.mxu0 %v1160
        %1176 = vmatpush.bf16.msra.mxu0 %v1159
        %1177 = vmatpush.bf16.msra.mxu0 %v1158
        %1178 = vmatpush.bf16.msra.mxu0 %v1157
        %1179 = vmatpush.bf16.msra.mxu0 %v1156
        %1180 = vmatmul.bf16.gmra.mxu0 %v1101
        %v1181 = vpop.f32.mrf.mxu0
        %v1182 = vadd.f32 %v1122, %v1181
        %v1183 = vpop.f32.mrf.mxu0
        %v1184 = vadd.f32 %v1122, %v1183
        %1185 = vdwg.mxu0
        %v1186 = vadd.f32 %v996, %v1182
        %v1187 = vadd.f32 %v997, %v1184
        %v1188 = vmax.f32 %v1186, 0.0
        %v1189 = vmax.f32 %v1187, 0.0
        %v1190 = vpack.c.bf16 %v1189, %v1188
        %s1191 = scalar_lea.vmem [#allocation2], 640
        %v1192 = vld [vmem:[%s1191] sm:$0xf]
        %v1193 = vld [vmem:[%s1191 + $0x4] sm:$0xf]
        %v1194 = vld [vmem:[%s1191 + $0x8] sm:$0xf]
        %v1195 = vld [vmem:[%s1191 + $0xc] sm:$0xf]
        %v1196 = vld [vmem:[%s1191 + $0x10] sm:$0xf]
        %v1197 = vld [vmem:[%s1191 + $0x14] sm:$0xf]
        %v1198 = vld [vmem:[%s1191 + $0x18] sm:$0xf]
        %v1199 = vld [vmem:[%s1191 + $0x1c] sm:$0xf]
        %v1200 = vld [vmem:[%s1191 + $0x20] sm:$0xf]
        %v1201 = vld [vmem:[%s1191 + $0x24] sm:$0xf]
        %v1202 = vld [vmem:[%s1191 + $0x28] sm:$0xf]
        %v1203 = vld [vmem:[%s1191 + $0x2c] sm:$0xf]
        %v1204 = vld [vmem:[%s1191 + $0x30] sm:$0xf]
        %v1205 = vld [vmem:[%s1191 + $0x34] sm:$0xf]
        %v1206 = vld [vmem:[%s1191 + $0x38] sm:$0xf]
        %v1207 = vld [vmem:[%s1191 + $0x3c] sm:$0xf]
        %s1208 = scalar_lea.vmem %s3, 10
        %v1209 = vld [vmem:[%s1208] sm:$0x1]
        %v1211 = vperm.slane %v1209, 0
        %v1229 = vunpack.c.l.b16 %v1192
        %v1230 = vunpack.c.l.b16 %v1193
        %v1231 = vunpack.c.l.b16 %v1194
        %v1232 = vunpack.c.l.b16 %v1195
        %v1233 = vunpack.c.l.b16 %v1196
        %v1234 = vunpack.c.l.b16 %v1197
        %v1235 = vunpack.c.l.b16 %v1198
        %v1236 = vunpack.c.l.b16 %v1199
        %v1237 = vunpack.c.l.b16 %v1200
        %v1238 = vunpack.c.l.b16 %v1201
        %v1239 = vunpack.c.l.b16 %v1202
        %v1240 = vunpack.c.l.b16 %v1203
        %v1241 = vunpack.c.l.b16 %v1204
        %v1242 = vunpack.c.l.b16 %v1205
        %v1243 = vunpack.c.l.b16 %v1206
        %v1244 = vunpack.c.l.b16 %v1207
        %v1245 = vpack.c.b16 %v1230, %v1229
        %v1246 = vpack.c.b16 %v1232, %v1231
        %v1247 = vpack.c.b16 %v1234, %v1233
        %v1248 = vpack.c.b16 %v1236, %v1235
        %v1249 = vpack.c.b16 %v1238, %v1237
        %v1250 = vpack.c.b16 %v1240, %v1239
        %v1251 = vpack.c.b16 %v1242, %v1241
        %v1252 = vpack.c.b16 %v1244, %v1243
        %1261 = vmatpush.bf16.msra.mxu0 %v1252
        %1262 = vmatpush.bf16.msra.mxu0 %v1251
        %1263 = vmatpush.bf16.msra.mxu0 %v1250
        %1264 = vmatpush.bf16.msra.mxu0 %v1249
        %1265 = vmatpush.bf16.msra.mxu0 %v1248
        %1266 = vmatpush.bf16.msra.mxu0 %v1247
        %1267 = vmatpush.bf16.msra.mxu0 %v1246
        %1268 = vmatpush.bf16.msra.mxu0 %v1245
        %1269 = vmatmul.bf16.gmra.mxu0 %v1190
        %v1270 = vpop.f32.mrf.mxu0
        %v1271 = vadd.f32 %v1211, %v1270
        %v1272 = vpop.f32.mrf.mxu0
        %v1273 = vadd.f32 %v1211, %v1272
        %1274 = vdwg.mxu0
        %1275 = vmatpush.bf16.msra.mxu0 0
        %1276 = vmatpush.bf16.msra.mxu0 0
        %1277 = vmatpush.bf16.msra.mxu0 0
        %1278 = vmatpush.bf16.msra.mxu0 0
        %1279 = vmatpush.bf16.msra.mxu0 0
        %1280 = vmatpush.bf16.msra.mxu0 0
        %1281 = vmatpush.bf16.msra.mxu0 0
        %1282 = vmatpush.bf16.msra.mxu0 %v1190
        %1283 = vmatmul.bf16.gmra.mxu0 %v331
        %v1284 = vpop.f32.mrf.mxu0
        %v1285 = vadd.f32 0.0, %v1284
        %v1286 = vpop.f32.mrf.mxu0
        %v1287 = vadd.f32 0.0, %v1286
        %1288 = vdwg.mxu0
        %v1289 = vadd.f32 %v1188, %v1285
        %v1290 = vadd.f32 %v1189, %v1287
        %v1291 = vpack.c.bf16 %v1290, %v1289
        %s1292 = scalar_lea.vmem [#allocation2], 704
        %v1293 = vld [vmem:[%s1292] sm:$0xf]
        %v1294 = vld [vmem:[%s1292 + $0x4] sm:$0xf]
        %v1295 = vld [vmem:[%s1292 + $0x8] sm:$0xf]
        %v1296 = vld [vmem:[%s1292 + $0xc] sm:$0xf]
        %v1297 = vld [vmem:[%s1292 + $0x10] sm:$0xf]
        %v1298 = vld [vmem:[%s1292 + $0x14] sm:$0xf]
        %v1299 = vld [vmem:[%s1292 + $0x18] sm:$0xf]
        %v1300 = vld [vmem:[%s1292 + $0x1c] sm:$0xf]
        %v1301 = vld [vmem:[%s1292 + $0x20] sm:$0xf]
        %v1302 = vld [vmem:[%s1292 + $0x24] sm:$0xf]
        %v1303 = vld [vmem:[%s1292 + $0x28] sm:$0xf]
        %v1304 = vld [vmem:[%s1292 + $0x2c] sm:$0xf]
        %v1305 = vld [vmem:[%s1292 + $0x30] sm:$0xf]
        %v1306 = vld [vmem:[%s1292 + $0x34] sm:$0xf]
        %v1307 = vld [vmem:[%s1292 + $0x38] sm:$0xf]
        %v1308 = vld [vmem:[%s1292 + $0x3c] sm:$0xf]
        %s1309 = scalar_lea.vmem %s3, 11
        %v1310 = vld [vmem:[%s1309] sm:$0x1]
        %v1312 = vperm.slane %v1310, 0
        %v1330 = vunpack.c.l.b16 %v1293
        %v1331 = vunpack.c.l.b16 %v1294
        %v1332 = vunpack.c.l.b16 %v1295
        %v1333 = vunpack.c.l.b16 %v1296
        %v1334 = vunpack.c.l.b16 %v1297
        %v1335 = vunpack.c.l.b16 %v1298
        %v1336 = vunpack.c.l.b16 %v1299
        %v1337 = vunpack.c.l.b16 %v1300
        %v1338 = vunpack.c.l.b16 %v1301
        %v1339 = vunpack.c.l.b16 %v1302
        %v1340 = vunpack.c.l.b16 %v1303
        %v1341 = vunpack.c.l.b16 %v1304
        %v1342 = vunpack.c.l.b16 %v1305
        %v1343 = vunpack.c.l.b16 %v1306
        %v1344 = vunpack.c.l.b16 %v1307
        %v1345 = vunpack.c.l.b16 %v1308
        %v1346 = vpack.c.b16 %v1331, %v1330
        %v1347 = vpack.c.b16 %v1333, %v1332
        %v1348 = vpack.c.b16 %v1335, %v1334
        %v1349 = vpack.c.b16 %v1337, %v1336
        %v1350 = vpack.c.b16 %v1339, %v1338
        %v1351 = vpack.c.b16 %v1341, %v1340
        %v1352 = vpack.c.b16 %v1343, %v1342
        %v1353 = vpack.c.b16 %v1345, %v1344
        %1362 = vmatpush.bf16.msra.mxu0 %v1353
        %1363 = vmatpush.bf16.msra.mxu0 %v1352
        %1364 = vmatpush.bf16.msra.mxu0 %v1351
        %1365 = vmatpush.bf16.msra.mxu0 %v1350
        %1366 = vmatpush.bf16.msra.mxu0 %v1349
        %1367 = vmatpush.bf16.msra.mxu0 %v1348
        %1368 = vmatpush.bf16.msra.mxu0 %v1347
        %1369 = vmatpush.bf16.msra.mxu0 %v1346
        %1370 = vmatmul.bf16.gmra.mxu0 %v1291
        %v1371 = vpop.f32.mrf.mxu0
        %v1372 = vadd.f32 %v1312, %v1371
        %v1373 = vpop.f32.mrf.mxu0
        %v1374 = vadd.f32 %v1312, %v1373
        %1375 = vdwg.mxu0
        %v1376 = vmax.f32 %v1372, 0.0
        %v1377 = vmax.f32 %v1374, 0.0
        %v1378 = vpack.c.bf16 %v1377, %v1376
        %s1379 = scalar_lea.vmem [#allocation2], 768
        %v1380 = vld [vmem:[%s1379] sm:$0xf]
        %v1381 = vld [vmem:[%s1379 + $0x4] sm:$0xf]
        %v1382 = vld [vmem:[%s1379 + $0x8] sm:$0xf]
        %v1383 = vld [vmem:[%s1379 + $0xc] sm:$0xf]
        %v1384 = vld [vmem:[%s1379 + $0x10] sm:$0xf]
        %v1385 = vld [vmem:[%s1379 + $0x14] sm:$0xf]
        %v1386 = vld [vmem:[%s1379 + $0x18] sm:$0xf]
        %v1387 = vld [vmem:[%s1379 + $0x1c] sm:$0xf]
        %v1388 = vld [vmem:[%s1379 + $0x20] sm:$0xf]
        %v1389 = vld [vmem:[%s1379 + $0x24] sm:$0xf]
        %v1390 = vld [vmem:[%s1379 + $0x28] sm:$0xf]
        %v1391 = vld [vmem:[%s1379 + $0x2c] sm:$0xf]
        %v1392 = vld [vmem:[%s1379 + $0x30] sm:$0xf]
        %v1393 = vld [vmem:[%s1379 + $0x34] sm:$0xf]
        %v1394 = vld [vmem:[%s1379 + $0x38] sm:$0xf]
        %v1395 = vld [vmem:[%s1379 + $0x3c] sm:$0xf]
        %s1396 = scalar_lea.vmem %s3, 12
        %v1397 = vld [vmem:[%s1396] sm:$0x1]
        %v1399 = vperm.slane %v1397, 0
        %v1417 = vunpack.c.l.b16 %v1380
        %v1418 = vunpack.c.l.b16 %v1381
        %v1419 = vunpack.c.l.b16 %v1382
        %v1420 = vunpack.c.l.b16 %v1383
        %v1421 = vunpack.c.l.b16 %v1384
        %v1422 = vunpack.c.l.b16 %v1385
        %v1423 = vunpack.c.l.b16 %v1386
        %v1424 = vunpack.c.l.b16 %v1387
        %v1425 = vunpack.c.l.b16 %v1388
        %v1426 = vunpack.c.l.b16 %v1389
        %v1427 = vunpack.c.l.b16 %v1390
        %v1428 = vunpack.c.l.b16 %v1391
        %v1429 = vunpack.c.l.b16 %v1392
        %v1430 = vunpack.c.l.b16 %v1393
        %v1431 = vunpack.c.l.b16 %v1394
        %v1432 = vunpack.c.l.b16 %v1395
        %v1433 = vpack.c.b16 %v1418, %v1417
        %v1434 = vpack.c.b16 %v1420, %v1419
        %v1435 = vpack.c.b16 %v1422, %v1421
        %v1436 = vpack.c.b16 %v1424, %v1423
        %v1437 = vpack.c.b16 %v1426, %v1425
        %v1438 = vpack.c.b16 %v1428, %v1427
        %v1439 = vpack.c.b16 %v1430, %v1429
        %v1440 = vpack.c.b16 %v1432, %v1431
        %1449 = vmatpush.bf16.msra.mxu0 %v1440
        %1450 = vmatpush.bf16.msra.mxu0 %v1439
        %1451 = vmatpush.bf16.msra.mxu0 %v1438
        %1452 = vmatpush.bf16.msra.mxu0 %v1437
        %1453 = vmatpush.bf16.msra.mxu0 %v1436
        %1454 = vmatpush.bf16.msra.mxu0 %v1435
        %1455 = vmatpush.bf16.msra.mxu0 %v1434
        %1456 = vmatpush.bf16.msra.mxu0 %v1433
        %1457 = vmatmul.bf16.gmra.mxu0 %v1378
        %v1458 = vpop.f32.mrf.mxu0
        %v1459 = vadd.f32 %v1399, %v1458
        %v1460 = vpop.f32.mrf.mxu0
        %v1461 = vadd.f32 %v1399, %v1460
        %1462 = vdwg.mxu0
        %v1463 = vadd.f32 %v1271, %v1459
        %v1464 = vadd.f32 %v1273, %v1461
        %1465 = vmatpush.bf16.msra.mxu0 0
        %1466 = vmatpush.bf16.msra.mxu0 0
        %1467 = vmatpush.bf16.msra.mxu0 0
        %1468 = vmatpush.bf16.msra.mxu0 0
        %1469 = vmatpush.bf16.msra.mxu0 0
        %1470 = vmatpush.bf16.msra.mxu0 0
        %1471 = vmatpush.bf16.msra.mxu0 0
        %1472 = vmatpush.bf16.msra.mxu0 %v1190
        %1473 = vmatmul.bf16.gmra.mxu0 %v529
        %v1474 = vpop.f32.mrf.mxu0
        %v1475 = vadd.f32 0.0, %v1474
        %v1476 = vpop.f32.mrf.mxu0
        %v1477 = vadd.f32 0.0, %v1476
        %1478 = vdwg.mxu0
        %v1479 = vadd.f32 %v1188, %v1475
        %v1480 = vadd.f32 %v1189, %v1477
        %v1481 = vpack.c.bf16 %v1480, %v1479
        %s1482 = scalar_lea.vmem [#allocation2], 832
        %v1483 = vld [vmem:[%s1482] sm:$0xf]
        %v1484 = vld [vmem:[%s1482 + $0x4] sm:$0xf]
        %v1485 = vld [vmem:[%s1482 + $0x8] sm:$0xf]
        %v1486 = vld [vmem:[%s1482 + $0xc] sm:$0xf]
        %v1487 = vld [vmem:[%s1482 + $0x10] sm:$0xf]
        %v1488 = vld [vmem:[%s1482 + $0x14] sm:$0xf]
        %v1489 = vld [vmem:[%s1482 + $0x18] sm:$0xf]
        %v1490 = vld [vmem:[%s1482 + $0x1c] sm:$0xf]
        %v1491 = vld [vmem:[%s1482 + $0x20] sm:$0xf]
        %v1492 = vld [vmem:[%s1482 + $0x24] sm:$0xf]
        %v1493 = vld [vmem:[%s1482 + $0x28] sm:$0xf]
        %v1494 = vld [vmem:[%s1482 + $0x2c] sm:$0xf]
        %v1495 = vld [vmem:[%s1482 + $0x30] sm:$0xf]
        %v1496 = vld [vmem:[%s1482 + $0x34] sm:$0xf]
        %v1497 = vld [vmem:[%s1482 + $0x38] sm:$0xf]
        %v1498 = vld [vmem:[%s1482 + $0x3c] sm:$0xf]
        %s1499 = scalar_lea.vmem %s3, 13
        %v1500 = vld [vmem:[%s1499] sm:$0x1]
        %v1502 = vperm.slane %v1500, 0
        %v1520 = vunpack.c.l.b16 %v1483
        %v1521 = vunpack.c.l.b16 %v1484
        %v1522 = vunpack.c.l.b16 %v1485
        %v1523 = vunpack.c.l.b16 %v1486
        %v1524 = vunpack.c.l.b16 %v1487
        %v1525 = vunpack.c.l.b16 %v1488
        %v1526 = vunpack.c.l.b16 %v1489
        %v1527 = vunpack.c.l.b16 %v1490
        %v1528 = vunpack.c.l.b16 %v1491
        %v1529 = vunpack.c.l.b16 %v1492
        %v1530 = vunpack.c.l.b16 %v1493
        %v1531 = vunpack.c.l.b16 %v1494
        %v1532 = vunpack.c.l.b16 %v1495
        %v1533 = vunpack.c.l.b16 %v1496
        %v1534 = vunpack.c.l.b16 %v1497
        %v1535 = vunpack.c.l.b16 %v1498
        %v1536 = vpack.c.b16 %v1521, %v1520
        %v1537 = vpack.c.b16 %v1523, %v1522
        %v1538 = vpack.c.b16 %v1525, %v1524
        %v1539 = vpack.c.b16 %v1527, %v1526
        %v1540 = vpack.c.b16 %v1529, %v1528
        %v1541 = vpack.c.b16 %v1531, %v1530
        %v1542 = vpack.c.b16 %v1533, %v1532
        %v1543 = vpack.c.b16 %v1535, %v1534
        %1552 = vmatpush.bf16.msra.mxu0 %v1543
        %1553 = vmatpush.bf16.msra.mxu0 %v1542
        %1554 = vmatpush.bf16.msra.mxu0 %v1541
        %1555 = vmatpush.bf16.msra.mxu0 %v1540
        %1556 = vmatpush.bf16.msra.mxu0 %v1539
        %1557 = vmatpush.bf16.msra.mxu0 %v1538
        %1558 = vmatpush.bf16.msra.mxu0 %v1537
        %1559 = vmatpush.bf16.msra.mxu0 %v1536
        %1560 = vmatmul.bf16.gmra.mxu0 %v1481
        %v1561 = vpop.f32.mrf.mxu0
        %v1562 = vadd.f32 %v1502, %v1561
        %v1563 = vpop.f32.mrf.mxu0
        %v1564 = vadd.f32 %v1502, %v1563
        %1565 = vdwg.mxu0
        %v1566 = vmax.f32 %v1562, 0.0
        %v1567 = vmax.f32 %v1564, 0.0
        %v1568 = vpack.c.bf16 %v1567, %v1566
        %s1569 = scalar_lea.vmem [#allocation2], 896
        %v1570 = vld [vmem:[%s1569] sm:$0xf]
        %v1571 = vld [vmem:[%s1569 + $0x4] sm:$0xf]
        %v1572 = vld [vmem:[%s1569 + $0x8] sm:$0xf]
        %v1573 = vld [vmem:[%s1569 + $0xc] sm:$0xf]
        %v1574 = vld [vmem:[%s1569 + $0x10] sm:$0xf]
        %v1575 = vld [vmem:[%s1569 + $0x14] sm:$0xf]
        %v1576 = vld [vmem:[%s1569 + $0x18] sm:$0xf]
        %v1577 = vld [vmem:[%s1569 + $0x1c] sm:$0xf]
        %v1578 = vld [vmem:[%s1569 + $0x20] sm:$0xf]
        %v1579 = vld [vmem:[%s1569 + $0x24] sm:$0xf]
        %v1580 = vld [vmem:[%s1569 + $0x28] sm:$0xf]
        %v1581 = vld [vmem:[%s1569 + $0x2c] sm:$0xf]
        %v1582 = vld [vmem:[%s1569 + $0x30] sm:$0xf]
        %v1583 = vld [vmem:[%s1569 + $0x34] sm:$0xf]
        %v1584 = vld [vmem:[%s1569 + $0x38] sm:$0xf]
        %v1585 = vld [vmem:[%s1569 + $0x3c] sm:$0xf]
        %s1586 = scalar_lea.vmem %s3, 14
        %v1587 = vld [vmem:[%s1586] sm:$0x1]
        %v1589 = vperm.slane %v1587, 0
        %v1607 = vunpack.c.l.b16 %v1570
        %v1608 = vunpack.c.l.b16 %v1571
        %v1609 = vunpack.c.l.b16 %v1572
        %v1610 = vunpack.c.l.b16 %v1573
        %v1611 = vunpack.c.l.b16 %v1574
        %v1612 = vunpack.c.l.b16 %v1575
        %v1613 = vunpack.c.l.b16 %v1576
        %v1614 = vunpack.c.l.b16 %v1577
        %v1615 = vunpack.c.l.b16 %v1578
        %v1616 = vunpack.c.l.b16 %v1579
        %v1617 = vunpack.c.l.b16 %v1580
        %v1618 = vunpack.c.l.b16 %v1581
        %v1619 = vunpack.c.l.b16 %v1582
        %v1620 = vunpack.c.l.b16 %v1583
        %v1621 = vunpack.c.l.b16 %v1584
        %v1622 = vunpack.c.l.b16 %v1585
        %v1623 = vpack.c.b16 %v1608, %v1607
        %v1624 = vpack.c.b16 %v1610, %v1609
        %v1625 = vpack.c.b16 %v1612, %v1611
        %v1626 = vpack.c.b16 %v1614, %v1613
        %v1627 = vpack.c.b16 %v1616, %v1615
        %v1628 = vpack.c.b16 %v1618, %v1617
        %v1629 = vpack.c.b16 %v1620, %v1619
        %v1630 = vpack.c.b16 %v1622, %v1621
        %1639 = vmatpush.bf16.msra.mxu0 %v1630
        %1640 = vmatpush.bf16.msra.mxu0 %v1629
        %1641 = vmatpush.bf16.msra.mxu0 %v1628
        %1642 = vmatpush.bf16.msra.mxu0 %v1627
        %1643 = vmatpush.bf16.msra.mxu0 %v1626
        %1644 = vmatpush.bf16.msra.mxu0 %v1625
        %1645 = vmatpush.bf16.msra.mxu0 %v1624
        %1646 = vmatpush.bf16.msra.mxu0 %v1623
        %1647 = vmatmul.bf16.gmra.mxu0 %v1568
        %v1648 = vpop.f32.mrf.mxu0
        %v1649 = vadd.f32 %v1589, %v1648
        %v1650 = vpop.f32.mrf.mxu0
        %v1651 = vadd.f32 %v1589, %v1650
        %1652 = vdwg.mxu0
        %v1653 = vadd.f32 %v1463, %v1649
        %v1654 = vadd.f32 %v1464, %v1651
        %v1655 = vunpack.c.l.bf16 %v240
        %vm1656 = vcmask 123904
        %v1657 = vsel %vm1656, %v1655, 0.0
        %1658 = vadd.xlane.f32.xlu0 %v1657
        %v1659 = vpop.xlane.xlu0 %1658
        %v1660 = vpack.c.bf16 %v1654, %v1653
        %v1662 = vsel %vm329, %v240, 0
        %1664 = vmatpush.bf16.msra.mxu0 0
        %1665 = vmatpush.bf16.msra.mxu0 0
        %1666 = vmatpush.bf16.msra.mxu0 0
        %1667 = vmatpush.bf16.msra.mxu0 0
        %1668 = vmatpush.bf16.msra.mxu0 0
        %1669 = vmatpush.bf16.msra.mxu0 0
        %1670 = vmatpush.bf16.msra.mxu0 0
        %1671 = vmatpush.bf16.msra.mxu0 %v1660
        %1672 = vmatmul.bf16.gmra.mxu0 %v1662
        %v1673 = vpop.f32.mrf.mxu0
        %v1674 = vadd.f32 0.0, %v1673
        %v1675 = vpop.f32.mrf.mxu0
        %1676 = vdwg.mxu0
        %v1677 = vmax.f32 %v1659, 1.0
        %v1678 = vrcp.pop %v1677
        %v1679 = vmul.f32 %v1677, %v1678
        %v1680 = vsub.f32 1.0, %v1679
        %v1681 = vmul.f32 %v1678, %v1680
        %v1682 = vadd.f32 %v1678, %v1681
        %vm1683 = vweird.f32 %v1677
        %vm1684 = vweird.f32 %v1678
        %vm1685 = vmor %vm1683, %vm1684
        %v1686 = vsel %vm1685, %v1678, %v1682
        %v1687 = vand.u32 2147483647, %v1677
        %vm1688 = vcmp.eq.f32.partialorder %v1687, 8.507059e+37
        %v1689 = vand.u32 %v1677, 2147483648
        %v1690 = vor.u32 1.1754944e-38, %v1689
        %v1691 = vsel %vm1688, %v1690, %v1686
        %v1692 = vmul.f32 %v1674, %v1691
        %1693 = vst [vmem:[%s222] sm:$0x3] %v1692
        %s1694 = sand.u32 %s121, 1
        %s1695 = scalar_lea.sflag [#allocation4], %s1694
        %s1696 = sand.u32 %s121, 1
        %s1697 = smul.addr %s1696, 2
        %s1698 = scalar_lea.vmem [#allocation5], %s1697
        // Predicated region
        $region41: #{gnn_forward.1} parent=35 // pred_check
          %p1699 = pneg %p131
        $region42: #{gnn_forward.1} parent=35 // pred_check_branch
          %1701 = sbr.rel (%p1699) target = $region44
        $region43: #{gnn_forward.1} parent=35 // pred_region
          %1703 = vsyncadd %s1695, 0
          %s1704 = smul.addr %s19, 2
          %s1705 = scalar_lea.hbm %s4, %s1704
          %s1707 = sshll.u32 %s1698, 4
          %s1708 = int_to_ptr.vmem [resolvable:$true] %s1707
          %s1709 = sshll.u32 %s1705, 4
          %s1710 = int_to_ptr.hbm [resolvable:$true] %s1709
          %1712 = dma.vmem_to_hbm [thread:$0]  %s1708, 32, %s1710, %s1695
        $region44: #{gnn_forward.1} parent=35 // pred_fallthru
          _
      $region36: #{gnn_forward.1} parent=5 // pred_fallthru
        _
      %p1713 = scmp.le.s32.totalorder 2, %s14
      // Predicated region
      $region45: #{gnn_forward.1} parent=5 // pred_check
        %p1714 = pneg %p1713
      $region46: #{gnn_forward.1} parent=5 // pred_check_branch
        %1716 = sbr.rel (%p1714) target = $region48
      $region47: #{gnn_forward.1} parent=5 // pred_region
        %s1717 = ssub.s32 %s14, 2
        // Predicated region
        $region49: #{gnn_forward.1} parent=47 // pred_check
          %p1718 = pneg %p137
        $region50: #{gnn_forward.1} parent=47 // pred_check_branch
          %1720 = sbr.rel (%p1718) target = $region52
        $region51: #{gnn_forward.1} parent=47 // pred_region
          %s1721 = sand.u32 %s122, 1
          %s1722 = scalar_lea.sflag [#allocation4], %s1721
          %s1723 = sand.u32 %s122, 1
          %s1724 = smul.addr %s1723, 2
          %s1725 = scalar_lea.vmem [#allocation5], %s1724
          %1727 = dma.done %s1722, 32
        $region52: #{gnn_forward.1} parent=47 // pred_fallthru
          _
      $region48: #{gnn_forward.1} parent=5 // pred_fallthru
        _
    $region6: #{gnn_forward.1} parent=1 // loop_footer
      %s18 = sadd.s32 1, %s14
    $region7: #{gnn_forward.1} parent=1 // loop_footer_branch
      %13 = sbr.rel target = $region3
    $region8: #{gnn_forward.1} parent=1 // loop_exit
      _
    %1728 = vsyncpa [#allocation3], 1
    %s1729 = scalar_lea.sflag [#allocation3], 1
    %1730 = vsyncpa %s1729, 1
    %1731 = vsyncpa [#allocation4], 1
    %s1732 = scalar_lea.sflag [#allocation4], 1
    %1733 = vsyncpa %s1732, 1

</llo_original>
